<compile_context>
chip_gen: v5e
topology: v5e:2x2
jax: 0.10.0
libtpu: 0.0.40
codegen_flags: <defaults>
</compile_context>

<pallas_src>
import math

import jax
import jax.numpy as jnp
from jax.experimental import pallas as pl
from jax.experimental.pallas import tpu as pltpu

LN_EPS = 1e-6


def _round_up(x, m):
    return ((x + m - 1) // m) * m


def _block_bytes(shape, dtype):
    n = 1
    for d in shape:
        n *= int(d)
    return n * jnp.dtype(dtype).itemsize


def _vmem_budget(block_bytes, scratch_bytes=0):
    # 2x per block (double-buffered pipeline) + scratch, then 2x headroom,
    # clamped to [8 MiB, 64 MiB] (64 MiB = v7x physical VMEM per TensorCore).
    need = 2 * block_bytes + scratch_bytes
    return int(min(max(2 * need, 8 * 1024 * 1024), 64 * 1024 * 1024))


def _layernorm(x, gamma, beta):
    mean = jnp.mean(x, axis=-1, keepdims=True)
    var = jnp.mean((x - mean) ** 2, axis=-1, keepdims=True)
    return (x - mean) * jax.lax.rsqrt(var + LN_EPS) * gamma + beta


def _gelu_exact(x):
    # F.gelu default (erf-based, exact)
    return 0.5 * x * (1.0 + jax.lax.erf(x * (1.0 / math.sqrt(2.0))))


def _mxu(a, b, dims=None):
    """bf16 MXU matmul with f32 accumulation."""
    a = a.astype(jnp.bfloat16)
    b = b.astype(jnp.bfloat16)
    if dims is None:
        return jnp.dot(a, b, preferred_element_type=jnp.float32)
    return jax.lax.dot_general(a, b, dimension_numbers=dims,
                               preferred_element_type=jnp.float32)


# ----------------------------------------------------------------------------
# Transformer body kernel: grid = (batch tiles, layers); per-layer weights are
# streamed (double-buffered) along the "arbitrary" layer axis.
# ----------------------------------------------------------------------------
def bert4rec_body_kernel(item_ref, pos_ref, bias_ref, embg_ref, embb_ref,
                         wqkv_ref, wo_ref, ln1g_ref, ln1b_ref,
                         w1_ref, b1_ref, w2_ref, b2_ref, ln2g_ref, ln2b_ref,
                         h_ref, x_scratch):
    l = pl.program_id(1)
    n_layers = pl.num_programs(1)
    TB, L, H = item_ref.shape
    inv_sqrt_h = 1.0 / math.sqrt(H)

    # ---- layer 0: embedding add + LayerNorm into the persistent scratch ----
    @pl.when(l == 0)
    def _():
        x = item_ref[...] + pos_ref[...]                    # (TB, L, H) f32
        x_scratch[...] = _layernorm(x.reshape(TB * L, H),
                                    embg_ref[...], embb_ref[...])

    x2 = x_scratch[...]                                     # (TB*L, H) f32
    bias = bias_ref[...]                                    # (TB, 1, L) additive key mask

    # ---- single-head self-attention (num_heads == 1 in the reference) ----
    q = _mxu(x2, wqkv_ref[0, 0]).reshape(TB, L, H)
    k = _mxu(x2, wqkv_ref[0, 1]).reshape(TB, L, H)
    v = _mxu(x2, wqkv_ref[0, 2]).reshape(TB, L, H)

    # scores[b, i, j] = q[b,i,:] . k[b,j,:]  (no explicit transpose)
    scores = _mxu(q, k, dims=(((2,), (2,)), ((0,), (0,)))) * inv_sqrt_h
    scores = scores + bias                                  # mask along keys
    scores = scores - jnp.max(scores, axis=-1, keepdims=True)
    p = jnp.exp(scores)
    attn = p * pl.reciprocal(jnp.sum(p, axis=-1, keepdims=True), approx=True)

    ctx = _mxu(attn, v, dims=(((2,), (1,)), ((0,), (0,))))  # (TB, L, H) f32
    attn_out = _mxu(ctx.reshape(TB * L, H), wo_ref[0]) + x2  # residual
    h = _layernorm(attn_out, ln1g_ref[0], ln1b_ref[0])

    # ---- position-wise feed-forward ----
    ff = _mxu(h, w1_ref[0]) + b1_ref[0]
    ff = _gelu_exact(ff)
    ff = _mxu(ff, w2_ref[0]) + b2_ref[0]
    x_new = _layernorm(ff + h, ln2g_ref[0], ln2b_ref[0])
    x_scratch[...] = x_new

    # ---- last layer: emit final hidden state (bf16 to halve the HBM write) ----
    @pl.when(l == n_layers - 1)
    def _():
        h_ref[...] = x_new.reshape(TB, L, H).astype(h_ref.dtype)


# ----------------------------------------------------------------------------
# Output projection kernel: tiled (rows x vocab lanes), fully parallel.
# ----------------------------------------------------------------------------
def out_proj_kernel(x_ref, w_ref, b_ref, o_ref):
    o_ref[...] = (_mxu(x_ref[...], w_ref[...]) + b_ref[...]).astype(o_ref.dtype)


# ----------------------------------------------------------------------------
# Parameter init (deterministic, synthetic); matmul weights stored bf16,
# LN / bias params f32; per-layer weights stacked along a leading layer axis.
# ----------------------------------------------------------------------------
def init_params(key, num_item, hidden, num_layers, max_len):
    v_emb = num_item + 2
    v_out = num_item + 1
    v_pad = _round_up(v_out, 128)
    keys = jax.random.split(key, 3 + num_layers)
    scale = 0.02

    item_emb = jax.random.normal(keys[0], (v_emb, hidden), jnp.float32) * scale
    item_emb = item_emb.at[0].set(0.0)          # padding_idx = 0
    pos_emb = jax.random.normal(keys[1], (max_len, hidden), jnp.float32) * scale

    wqkv, wo, w1, w2 = [], [], [], []
    for l in range(num_layers):
        bk = jax.random.split(keys[3 + l], 6)
        wq = jax.random.normal(bk[0], (hidden, hidden), jnp.float32) * scale
        wk = jax.random.normal(bk[1], (hidden, hidden), jnp.float32) * scale
        wv = jax.random.normal(bk[2], (hidden, hidden), jnp.float32) * scale
        wqkv.append(jnp.stack([wq, wk, wv]))                        # (3, H, H)
        wo.append(jax.random.normal(bk[3], (hidden, hidden), jnp.float32) * scale)
        w1.append(jax.random.normal(bk[4], (hidden, 4 * hidden), jnp.float32) * scale)
        w2.append(jax.random.normal(bk[5], (4 * hidden, hidden), jnp.float32) * scale)

    out_w = jax.random.normal(keys[2], (hidden, v_out), jnp.float32) * scale
    out_w_pad = jnp.zeros((hidden, v_pad), jnp.float32).at[:, :v_out].set(out_w)

    return dict(
        item_emb=item_emb,
        pos_emb=pos_emb,
        emb_ln_g=jnp.ones((1, hidden), jnp.float32),
        emb_ln_b=jnp.zeros((1, hidden), jnp.float32),
        wqkv=jnp.stack(wqkv).astype(jnp.bfloat16),                  # (NL, 3, H, H)
        wo=jnp.stack(wo).astype(jnp.bfloat16),                      # (NL, H, H)
        ln1_g=jnp.ones((num_layers, 1, hidden), jnp.float32),
        ln1_b=jnp.zeros((num_layers, 1, hidden), jnp.float32),
        w1=jnp.stack(w1).astype(jnp.bfloat16),                      # (NL, H, 4H)
        b1=jnp.zeros((num_layers, 1, 4 * hidden), jnp.float32),
        w2=jnp.stack(w2).astype(jnp.bfloat16),                      # (NL, 4H, H)
        b2=jnp.zeros((num_layers, 1, hidden), jnp.float32),
        ln2_g=jnp.ones((num_layers, 1, hidden), jnp.float32),
        ln2_b=jnp.zeros((num_layers, 1, hidden), jnp.float32),
        out_w=out_w_pad.astype(jnp.bfloat16),                       # (H, V_pad)
        out_b=jnp.zeros((1, v_pad), jnp.float32),
        v_out=v_out,                                                # python int
    )


# ----------------------------------------------------------------------------
# Forward
# ----------------------------------------------------------------------------
def bert4rec_forward(params, log_seqs):
    B, L = log_seqs.shape
    H = params["item_emb"].shape[1]
    H4 = 4 * H
    V_pad = params["out_w"].shape[1]
    v_out = params["v_out"]
    NL = params["wqkv"].shape[0]
    TB = 1   # batch tile: attention needs the full sequence per batch element

    # ---- wrapper-side glue: embedding gathers + additive key-mask bias ----
    item_e = jnp.take(params["item_emb"], log_seqs, axis=0)         # (B, L, H)
    pos_e = params["pos_emb"][:L][None]                             # (1, L, H)
    bias = jnp.where(log_seqs > 0, 0.0, -1e9).astype(jnp.float32)[:, None, :]  # (B, 1, L)

    def row_spec(shape):
        nz = len(shape) - 1
        return pl.BlockSpec((TB,) + tuple(shape[1:]),
                            lambda b, l, _nz=nz: (b,) + (0,) * _nz)

    def layer_spec(shape):
        nz = len(shape) - 1
        return pl.BlockSpec((1,) + tuple(shape[1:]),
                            lambda b, l, _nz=nz: (l,) + (0,) * _nz)

    def const_spec(shape):
        nz = len(shape)
        return pl.BlockSpec(tuple(shape), lambda b, l, _nz=nz: (0,) * _nz)

    # ---- transformer body: grid = (batch tiles, layers) ----
    body_blocks = [
        ((TB, L, H), jnp.float32), ((1, L, H), jnp.float32), ((TB, 1, L), jnp.float32),
        ((1, H), jnp.float32), ((1, H), jnp.float32),
        ((1, 3, H, H), jnp.bfloat16), ((1, H, H), jnp.bfloat16),
        ((1, 1, H), jnp.float32), ((1, 1, H), jnp.float32),
        ((1, H, H4), jnp.bfloat16), ((1, 1, H4), jnp.float32),
        ((1, H4, H), jnp.bfloat16), ((1, 1, H), jnp.float32),
        ((1, 1, H), jnp.float32), ((1, 1, H), jnp.float32),
        ((TB, L, H), jnp.bfloat16),                                  # output block
    ]
    body_vmem = _vmem_budget(
        sum(_block_bytes(s, d) for s, d in body_blocks),
        scratch_bytes=_block_bytes((TB * L, H), jnp.float32))

    hidden = pl.pallas_call(
        bert4rec_body_kernel,
        out_shape=jax.ShapeDtypeStruct((B, L, H), jnp.bfloat16),
        grid=(B // TB, NL),
        in_specs=[
            row_spec((B, L, H)),                 # item_e
            const_spec((1, L, H)),               # pos_e
            row_spec((B, 1, L)),                 # mask bias
            const_spec(params["emb_ln_g"].shape),
            const_spec(params["emb_ln_b"].shape),
            layer_spec(params["wqkv"].shape),
            layer_spec(params["wo"].shape),
            layer_spec(params["ln1_g"].shape),
            layer_spec(params["ln1_b"].shape),
            layer_spec(params["w1"].shape),
            layer_spec(params["b1"].shape),
            layer_spec(params["w2"].shape),
            layer_spec(params["b2"].shape),
            layer_spec(params["ln2_g"].shape),
            layer_spec(params["ln2_b"].shape),
        ],
        out_specs=row_spec((B, L, H)),
        scratch_shapes=[pltpu.VMEM((TB * L, H), jnp.float32)],
        compiler_params=pltpu.CompilerParams(
            dimension_semantics=("parallel", "arbitrary"),
            vmem_limit_bytes=body_vmem),
    )(item_e, pos_e, bias,
      params["emb_ln_g"], params["emb_ln_b"],
      params["wqkv"], params["wo"], params["ln1_g"], params["ln1_b"],
      params["w1"], params["b1"], params["w2"], params["b2"],
      params["ln2_g"], params["ln2_b"])

    # ---- output projection: separate, fully-parallel tiled pallas_call ----
    M = B * L
    x2d = hidden.reshape(M, H)
    TM = M if M <= 256 else 256
    assert M % TM == 0
    TN = 512 if (V_pad >= 512 and V_pad % 512 == 0) else 128
    assert V_pad % TN == 0

    proj_blocks = [((TM, H), jnp.bfloat16), ((H, TN), jnp.bfloat16),
                   ((1, TN), jnp.float32), ((TM, TN), jnp.bfloat16)]
    proj_vmem = _vmem_budget(sum(_block_bytes(s, d) for s, d in proj_blocks))

    logits2d = pl.pallas_call(
        out_proj_kernel,
        out_shape=jax.ShapeDtypeStruct((M, V_pad), jnp.bfloat16),
        grid=(M // TM, V_pad // TN),
        in_specs=[
            pl.BlockSpec((TM, H), lambda i, j: (i, 0)),
            pl.BlockSpec((H, TN), lambda i, j: (0, j)),
            pl.BlockSpec((1, TN), lambda i, j: (0, j)),
        ],
        out_specs=pl.BlockSpec((TM, TN), lambda i, j: (i, j)),
        compiler_params=pltpu.CompilerParams(
            dimension_semantics=("parallel", "parallel"),
            vmem_limit_bytes=proj_vmem),
    )(x2d, params["out_w"], params["out_b"])

    # drop the lane-padding columns, restore (B, L, num_item + 1); bf16 logits
    return logits2d[:, :v_out].reshape(B, L, v_out)


if __name__ == "__main__":
    # Small config consistent with the module's forward:
    num_user = 10          # unused in forward
    num_item = 63          # -> item_emb rows = 65, output dim = 64
    hidden_units = 32
    num_heads = 1          # reference .view() only type-checks for 1 head
    num_layers = 2
    max_len = 8
    dropout_rate = 0.1     # identity (eval-mode forward)

    B, L = 2, max_len

    key = jax.random.PRNGKey(0)
    pkey, dkey = jax.random.split(key)
    params = init_params(pkey, num_item, hidden_units, num_layers, max_len)

    # log_seqs: ints in [0, num_item+1], zeros act as padding (masked out)
    log_seqs = jax.random.randint(dkey, (B, L), 0, num_item + 2, dtype=jnp.int32)

    out = bert4rec_forward(params, log_seqs)
    out = jax.block_until_ready(out)

    assert out.shape == (B, L, num_item + 1)
    assert bool(jnp.all(jnp.isfinite(out.astype(jnp.float32))))
    print("KERNEL_OK")
</pallas_src>

<mosaic_0001>
module attributes {stable_mosaic.version = 11 : i64} {
  func.func @bert4rec_body_kernel(%arg0: i32, %arg1: i32, %arg2: memref<1x8x32xf32, #tpu.memory_space<vmem>>, %arg3: memref<1x8x32xf32, #tpu.memory_space<vmem>>, %arg4: memref<1x1x8xf32, #tpu.memory_space<vmem>>, %arg5: memref<1x32xf32, #tpu.memory_space<vmem>>, %arg6: memref<1x32xf32, #tpu.memory_space<vmem>>, %arg7: memref<1x3x32x32xbf16, #tpu.memory_space<vmem>>, %arg8: memref<1x32x32xbf16, #tpu.memory_space<vmem>>, %arg9: memref<1x1x32xf32, #tpu.memory_space<vmem>>, %arg10: memref<1x1x32xf32, #tpu.memory_space<vmem>>, %arg11: memref<1x32x128xbf16, #tpu.memory_space<vmem>>, %arg12: memref<1x1x128xf32, #tpu.memory_space<vmem>>, %arg13: memref<1x128x32xbf16, #tpu.memory_space<vmem>>, %arg14: memref<1x1x32xf32, #tpu.memory_space<vmem>>, %arg15: memref<1x1x32xf32, #tpu.memory_space<vmem>>, %arg16: memref<1x1x32xf32, #tpu.memory_space<vmem>>, %arg17: memref<1x8x32xbf16, #tpu.memory_space<vmem>>, %arg18: memref<8x32xf32, #tpu.memory_space<vmem>>) attributes {dimension_semantics = [#tpu.dimension_semantics<parallel>, #tpu.dimension_semantics<arbitrary>], iteration_bounds = array<i64: 2, 2>, scalar_prefetch = 0 : i64, scratch_operands = 1 : i64, tpu.core_type = #tpu.core_type<tc>, window_params = [{transform_indices = @transform_0, window_bounds = array<i64: 1, 8, 32>}, {pipeline_mode = #tpu.pipeline_mode<synchronous>, transform_indices = @transform_1, window_bounds = array<i64: 1, 8, 32>}, {transform_indices = @transform_2, window_bounds = array<i64: 1, 1, 8>}, {pipeline_mode = #tpu.pipeline_mode<synchronous>, transform_indices = @transform_3, window_bounds = array<i64: 1, 32>}, {pipeline_mode = #tpu.pipeline_mode<synchronous>, transform_indices = @transform_4, window_bounds = array<i64: 1, 32>}, {transform_indices = @transform_5, window_bounds = array<i64: 1, 3, 32, 32>}, {transform_indices = @transform_6, window_bounds = array<i64: 1, 32, 32>}, {transform_indices = @transform_7, window_bounds = array<i64: 1, 1, 32>}, {transform_indices = @transform_8, window_bounds = array<i64: 1, 1, 32>}, {transform_indices = @transform_9, window_bounds = array<i64: 1, 32, 128>}, {transform_indices = @transform_10, window_bounds = array<i64: 1, 1, 128>}, {transform_indices = @transform_11, window_bounds = array<i64: 1, 128, 32>}, {transform_indices = @transform_12, window_bounds = array<i64: 1, 1, 32>}, {transform_indices = @transform_13, window_bounds = array<i64: 1, 1, 32>}, {transform_indices = @transform_14, window_bounds = array<i64: 1, 1, 32>}, {transform_indices = @transform_15, window_bounds = array<i64: 1, 8, 32>}]} {
    %c0_i32 = arith.constant 0 : i32
    %0 = arith.cmpi eq, %arg1, %c0_i32 : i32
    %1 = arith.extui %0 : i1 to i32
    %c0_i32_0 = arith.constant 0 : i32
    %2 = arith.cmpi ne, %1, %c0_i32_0 : i32
    scf.if %2 {
      %c0_68 = arith.constant 0 : index
      %c0_69 = arith.constant 0 : index
      %c0_70 = arith.constant 0 : index
      %127 = vector.load %arg2[%c0_68, %c0_69, %c0_70] : memref<1x8x32xf32, #tpu.memory_space<vmem>>, vector<1x8x32xf32>
      %c0_71 = arith.constant 0 : index
      %c0_72 = arith.constant 0 : index
      %c0_73 = arith.constant 0 : index
      %128 = vector.load %arg3[%c0_71, %c0_72, %c0_73] : memref<1x8x32xf32, #tpu.memory_space<vmem>>, vector<1x8x32xf32>
      %129 = arith.addf %127, %128 : vector<1x8x32xf32>
      %130 = vector.shape_cast %129 : vector<1x8x32xf32> to vector<8x32xf32>
      %c0_74 = arith.constant 0 : index
      %c0_75 = arith.constant 0 : index
      %131 = vector.load %arg5[%c0_74, %c0_75] : memref<1x32xf32, #tpu.memory_space<vmem>>, vector<1x32xf32>
      %c0_76 = arith.constant 0 : index
      %c0_77 = arith.constant 0 : index
      %132 = vector.load %arg6[%c0_76, %c0_77] : memref<1x32xf32, #tpu.memory_space<vmem>>, vector<1x32xf32>
      %cst_78 = arith.constant dense<0.000000e+00> : vector<8xf32>
      %133 = vector.multi_reduction <add>, %130, %cst_78 [1] : vector<8x32xf32> to vector<8xf32>
      %134 = vector.shape_cast %133 : vector<8xf32> to vector<8x1xf32>
      %cst_79 = arith.constant 3.200000e+01 : f32
      %135 = vector.broadcast %cst_79 : f32 to vector<8x1xf32>
      %136 = arith.divf %134, %135 : vector<8x1xf32>
      %137 = vector.broadcast %136 : vector<8x1xf32> to vector<8x32xf32>
      %138 = arith.subf %130, %137 : vector<8x32xf32>
      %139 = arith.mulf %138, %138 : vector<8x32xf32>
      %cst_80 = arith.constant dense<0.000000e+00> : vector<8xf32>
      %140 = vector.multi_reduction <add>, %139, %cst_80 [1] : vector<8x32xf32> to vector<8xf32>
      %141 = vector.shape_cast %140 : vector<8xf32> to vector<8x1xf32>
      %cst_81 = arith.constant 3.200000e+01 : f32
      %142 = vector.broadcast %cst_81 : f32 to vector<8x1xf32>
      %143 = arith.divf %141, %142 : vector<8x1xf32>
      %144 = vector.broadcast %136 : vector<8x1xf32> to vector<8x32xf32>
      %145 = arith.subf %130, %144 : vector<8x32xf32>
      %cst_82 = arith.constant 9.99999997E-7 : f32
      %146 = vector.broadcast %cst_82 : f32 to vector<8x1xf32>
      %147 = arith.addf %143, %146 : vector<8x1xf32>
      %148 = math.rsqrt %147 : vector<8x1xf32>
      %149 = vector.broadcast %148 : vector<8x1xf32> to vector<8x32xf32>
      %150 = arith.mulf %145, %149 : vector<8x32xf32>
      %151 = vector.broadcast %131 : vector<1x32xf32> to vector<8x32xf32>
      %152 = arith.mulf %150, %151 : vector<8x32xf32>
      %153 = vector.broadcast %132 : vector<1x32xf32> to vector<8x32xf32>
      %154 = arith.addf %152, %153 : vector<8x32xf32>
      %c0_83 = arith.constant 0 : index
      %c0_84 = arith.constant 0 : index
      %155 = vector.load %arg18[%c0_83, %c0_84] : memref<8x32xf32, #tpu.memory_space<vmem>>, vector<8x32xf32>
      tpu.vector_store %arg18[%c0_83, %c0_84], %154 {strides = array<i32>} : memref<8x32xf32, #tpu.memory_space<vmem>>, vector<8x32xf32>,
    } else {
    }
    %c0 = arith.constant 0 : index
    %c0_1 = arith.constant 0 : index
    %3 = vector.load %arg18[%c0, %c0_1] : memref<8x32xf32, #tpu.memory_space<vmem>>, vector<8x32xf32>
    %c0_2 = arith.constant 0 : index
    %c0_3 = arith.constant 0 : index
    %c0_4 = arith.constant 0 : index
    %4 = vector.load %arg4[%c0_2, %c0_3, %c0_4] : memref<1x1x8xf32, #tpu.memory_space<vmem>>, vector<1x1x8xf32>
    %c0_5 = arith.constant 0 : index
    %c0_6 = arith.constant 0 : index
    %c0_7 = arith.constant 0 : index
    %c0_8 = arith.constant 0 : index
    %5 = vector.load %arg7[%c0_5, %c0_6, %c0_7, %c0_8] : memref<1x3x32x32xbf16, #tpu.memory_space<vmem>>, vector<1x1x32x32xbf16>
    %6 = vector.shape_cast %5 : vector<1x1x32x32xbf16> to vector<32x32xbf16>
    %7 = arith.truncf %3 : vector<8x32xf32> to vector<8x32xbf16>
    %cst = arith.constant dense<0.000000e+00> : vector<8x32xf32>
    %8 = tpu.matmul %7, %6, %cst {dimension_numbers = #tpu.dot_dimension_numbers<[1], [0], [0], [1], [0, 0, 1, 1], [], []>} : vector<8x32xbf16>, vector<32x32xbf16>, vector<8x32xf32> -> vector<8x32xf32>
    %9 = vector.shape_cast %8 : vector<8x32xf32> to vector<1x8x32xf32>
    %c0_9 = arith.constant 0 : index
    %c1 = arith.constant 1 : index
    %c0_10 = arith.constant 0 : index
    %c0_11 = arith.constant 0 : index
    %10 = vector.load %arg7[%c0_9, %c1, %c0_10, %c0_11] : memref<1x3x32x32xbf16, #tpu.memory_space<vmem>>, vector<1x1x32x32xbf16>
    %11 = vector.shape_cast %10 : vector<1x1x32x32xbf16> to vector<32x32xbf16>
    %12 = arith.truncf %3 : vector<8x32xf32> to vector<8x32xbf16>
    %cst_12 = arith.constant dense<0.000000e+00> : vector<8x32xf32>
    %13 = tpu.matmul %12, %11, %cst_12 {dimension_numbers = #tpu.dot_dimension_numbers<[1], [0], [0], [1], [0, 0, 1, 1], [], []>} : vector<8x32xbf16>, vector<32x32xbf16>, vector<8x32xf32> -> vector<8x32xf32>
    %14 = vector.shape_cast %13 : vector<8x32xf32> to vector<1x8x32xf32>
    %c0_13 = arith.constant 0 : index
    %c2 = arith.constant 2 : index
    %c0_14 = arith.constant 0 : index
    %c0_15 = arith.constant 0 : index
    %15 = vector.load %arg7[%c0_13, %c2, %c0_14, %c0_15] : memref<1x3x32x32xbf16, #tpu.memory_space<vmem>>, vector<1x1x32x32xbf16>
    %16 = vector.shape_cast %15 : vector<1x1x32x32xbf16> to vector<32x32xbf16>
    %17 = arith.truncf %3 : vector<8x32xf32> to vector<8x32xbf16>
    %cst_16 = arith.constant dense<0.000000e+00> : vector<8x32xf32>
    %18 = tpu.matmul %17, %16, %cst_16 {dimension_numbers = #tpu.dot_dimension_numbers<[1], [0], [0], [1], [0, 0, 1, 1], [], []>} : vector<8x32xbf16>, vector<32x32xbf16>, vector<8x32xf32> -> vector<8x32xf32>
    %19 = vector.shape_cast %18 : vector<8x32xf32> to vector<1x8x32xf32>
    %20 = arith.truncf %9 : vector<1x8x32xf32> to vector<1x8x32xbf16>
    %21 = arith.truncf %14 : vector<1x8x32xf32> to vector<1x8x32xbf16>
    %cst_17 = arith.constant dense<0.000000e+00> : vector<1x8x8xf32>
    %22 = tpu.matmul %20, %21, %cst_17 {dimension_numbers = #tpu.dot_dimension_numbers<[2], [2], [1], [1], [0, 0, 0, 1, 1, 1], [0], [0]>} : vector<1x8x32xbf16>, vector<1x8x32xbf16>, vector<1x8x8xf32> -> vector<1x8x8xf32>
    %cst_18 = arith.constant 0.176776692 : f32
    %23 = vector.broadcast %cst_18 : f32 to vector<1x8x8xf32>
    %24 = arith.mulf %22, %23 : vector<1x8x8xf32>
    %25 = vector.broadcast %4 : vector<1x1x8xf32> to vector<1x8x8xf32>
    %26 = arith.addf %24, %25 : vector<1x8x8xf32>
    %cst_19 = arith.constant dense<0xFF800000> : vector<1x8xf32>
    %27 = vector.multi_reduction <maximumf>, %26, %cst_19 [2] : vector<1x8x8xf32> to vector<1x8xf32>
    %28 = vector.shape_cast %27 : vector<1x8xf32> to vector<1x8x1xf32>
    %29 = vector.broadcast %28 : vector<1x8x1xf32> to vector<1x8x8xf32>
    %30 = arith.subf %26, %29 : vector<1x8x8xf32>
    %31 = math.exp %30 : vector<1x8x8xf32>
    %cst_20 = arith.constant dense<0.000000e+00> : vector<1x8xf32>
    %32 = vector.multi_reduction <add>, %31, %cst_20 [2] : vector<1x8x8xf32> to vector<1x8xf32>
    %33 = vector.shape_cast %32 : vector<1x8xf32> to vector<1x8x1xf32>
    %34 = tpu.reciprocal %33 {approx = true} : vector<1x8x1xf32> -> vector<1x8x1xf32>
    %35 = vector.broadcast %34 : vector<1x8x1xf32> to vector<1x8x8xf32>
    %36 = arith.mulf %31, %35 : vector<1x8x8xf32>
    %37 = arith.truncf %36 : vector<1x8x8xf32> to vector<1x8x8xbf16>
    %38 = arith.truncf %19 : vector<1x8x32xf32> to vector<1x8x32xbf16>
    %cst_21 = arith.constant dense<0.000000e+00> : vector<1x8x32xf32>
    %39 = tpu.matmul %37, %38, %cst_21 {dimension_numbers = #tpu.dot_dimension_numbers<[2], [1], [1], [2], [0, 0, 0, 1, 1, 2], [0], [0]>} : vector<1x8x8xbf16>, vector<1x8x32xbf16>, vector<1x8x32xf32> -> vector<1x8x32xf32>
    %40 = vector.shape_cast %39 : vector<1x8x32xf32> to vector<8x32xf32>
    %c0_22 = arith.constant 0 : index
    %c0_23 = arith.constant 0 : index
    %c0_24 = arith.constant 0 : index
    %41 = vector.load %arg8[%c0_22, %c0_23, %c0_24] : memref<1x32x32xbf16, #tpu.memory_space<vmem>>, vector<1x32x32xbf16>
    %42 = vector.shape_cast %41 : vector<1x32x32xbf16> to vector<32x32xbf16>
    %43 = arith.truncf %40 : vector<8x32xf32> to vector<8x32xbf16>
    %cst_25 = arith.constant dense<0.000000e+00> : vector<8x32xf32>
    %44 = tpu.matmul %43, %42, %cst_25 {dimension_numbers = #tpu.dot_dimension_numbers<[1], [0], [0], [1], [0, 0, 1, 1], [], []>} : vector<8x32xbf16>, vector<32x32xbf16>, vector<8x32xf32> -> vector<8x32xf32>
    %45 = arith.addf %44, %3 : vector<8x32xf32>
    %c0_26 = arith.constant 0 : index
    %c0_27 = arith.constant 0 : index
    %c0_28 = arith.constant 0 : index
    %46 = vector.load %arg9[%c0_26, %c0_27, %c0_28] : memref<1x1x32xf32, #tpu.memory_space<vmem>>, vector<1x1x32xf32>
    %47 = vector.shape_cast %46 : vector<1x1x32xf32> to vector<1x32xf32>
    %c0_29 = arith.constant 0 : index
    %c0_30 = arith.constant 0 : index
    %c0_31 = arith.constant 0 : index
    %48 = vector.load %arg10[%c0_29, %c0_30, %c0_31] : memref<1x1x32xf32, #tpu.memory_space<vmem>>, vector<1x1x32xf32>
    %49 = vector.shape_cast %48 : vector<1x1x32xf32> to vector<1x32xf32>
    %cst_32 = arith.constant dense<0.000000e+00> : vector<8xf32>
    %50 = vector.multi_reduction <add>, %45, %cst_32 [1] : vector<8x32xf32> to vector<8xf32>
    %51 = vector.shape_cast %50 : vector<8xf32> to vector<8x1xf32>
    %cst_33 = arith.constant 3.200000e+01 : f32
    %52 = vector.broadcast %cst_33 : f32 to vector<8x1xf32>
    %53 = arith.divf %51, %52 : vector<8x1xf32>
    %54 = vector.broadcast %53 : vector<8x1xf32> to vector<8x32xf32>
    %55 = arith.subf %45, %54 : vector<8x32xf32>
    %56 = arith.mulf %55, %55 : vector<8x32xf32>
    %cst_34 = arith.constant dense<0.000000e+00> : vector<8xf32>
    %57 = vector.multi_reduction <add>, %56, %cst_34 [1] : vector<8x32xf32> to vector<8xf32>
    %58 = vector.shape_cast %57 : vector<8xf32> to vector<8x1xf32>
    %cst_35 = arith.constant 3.200000e+01 : f32
    %59 = vector.broadcast %cst_35 : f32 to vector<8x1xf32>
    %60 = arith.divf %58, %59 : vector<8x1xf32>
    %61 = vector.broadcast %53 : vector<8x1xf32> to vector<8x32xf32>
    %62 = arith.subf %45, %61 : vector<8x32xf32>
    %cst_36 = arith.constant 9.99999997E-7 : f32
    %63 = vector.broadcast %cst_36 : f32 to vector<8x1xf32>
    %64 = arith.addf %60, %63 : vector<8x1xf32>
    %65 = math.rsqrt %64 : vector<8x1xf32>
    %66 = vector.broadcast %65 : vector<8x1xf32> to vector<8x32xf32>
    %67 = arith.mulf %62, %66 : vector<8x32xf32>
    %68 = vector.broadcast %47 : vector<1x32xf32> to vector<8x32xf32>
    %69 = arith.mulf %67, %68 : vector<8x32xf32>
    %70 = vector.broadcast %49 : vector<1x32xf32> to vector<8x32xf32>
    %71 = arith.addf %69, %70 : vector<8x32xf32>
    %c0_37 = arith.constant 0 : index
    %c0_38 = arith.constant 0 : index
    %c0_39 = arith.constant 0 : index
    %72 = vector.load %arg11[%c0_37, %c0_38, %c0_39] : memref<1x32x128xbf16, #tpu.memory_space<vmem>>, vector<1x32x128xbf16>
    %73 = vector.shape_cast %72 : vector<1x32x128xbf16> to vector<32x128xbf16>
    %74 = arith.truncf %71 : vector<8x32xf32> to vector<8x32xbf16>
    %cst_40 = arith.constant dense<0.000000e+00> : vector<8x128xf32>
    %75 = tpu.matmul %74, %73, %cst_40 {dimension_numbers = #tpu.dot_dimension_numbers<[1], [0], [0], [1], [0, 0, 1, 1], [], []>} : vector<8x32xbf16>, vector<32x128xbf16>, vector<8x128xf32> -> vector<8x128xf32>
    %c0_41 = arith.constant 0 : index
    %c0_42 = arith.constant 0 : index
    %c0_43 = arith.constant 0 : index
    %76 = vector.load %arg12[%c0_41, %c0_42, %c0_43] : memref<1x1x128xf32, #tpu.memory_space<vmem>>, vector<1x1x128xf32>
    %77 = vector.shape_cast %76 : vector<1x1x128xf32> to vector<1x128xf32>
    %78 = vector.broadcast %77 : vector<1x128xf32> to vector<8x128xf32>
    %79 = arith.addf %75, %78 : vector<8x128xf32>
    %cst_44 = arith.constant 5.000000e-01 : f32
    %80 = vector.broadcast %cst_44 : f32 to vector<8x128xf32>
    %81 = arith.mulf %80, %79 : vector<8x128xf32>
    %cst_45 = arith.constant 0.707106769 : f32
    %82 = vector.broadcast %cst_45 : f32 to vector<8x128xf32>
    %83 = arith.mulf %79, %82 : vector<8x128xf32>
    %84 = math.erf %83 : vector<8x128xf32>
    %cst_46 = arith.constant 1.000000e+00 : f32
    %85 = vector.broadcast %cst_46 : f32 to vector<8x128xf32>
    %86 = arith.addf %85, %84 : vector<8x128xf32>
    %87 = arith.mulf %81, %86 : vector<8x128xf32>
    %c0_47 = arith.constant 0 : index
    %c0_48 = arith.constant 0 : index
    %c0_49 = arith.constant 0 : index
    %88 = vector.load %arg13[%c0_47, %c0_48, %c0_49] : memref<1x128x32xbf16, #tpu.memory_space<vmem>>, vector<1x128x32xbf16>
    %89 = vector.shape_cast %88 : vector<1x128x32xbf16> to vector<128x32xbf16>
    %90 = arith.truncf %87 : vector<8x128xf32> to vector<8x128xbf16>
    %cst_50 = arith.constant dense<0.000000e+00> : vector<8x32xf32>
    %91 = tpu.matmul %90, %89, %cst_50 {dimension_numbers = #tpu.dot_dimension_numbers<[1], [0], [0], [1], [0, 0, 1, 1], [], []>} : vector<8x128xbf16>, vector<128x32xbf16>, vector<8x32xf32> -> vector<8x32xf32>
    %c0_51 = arith.constant 0 : index
    %c0_52 = arith.constant 0 : index
    %c0_53 = arith.constant 0 : index
    %92 = vector.load %arg14[%c0_51, %c0_52, %c0_53] : memref<1x1x32xf32, #tpu.memory_space<vmem>>, vector<1x1x32xf32>
    %93 = vector.shape_cast %92 : vector<1x1x32xf32> to vector<1x32xf32>
    %94 = vector.broadcast %93 : vector<1x32xf32> to vector<8x32xf32>
    %95 = arith.addf %91, %94 : vector<8x32xf32>
    %96 = arith.addf %95, %71 : vector<8x32xf32>
    %c0_54 = arith.constant 0 : index
    %c0_55 = arith.constant 0 : index
    %c0_56 = arith.constant 0 : index
    %97 = vector.load %arg15[%c0_54, %c0_55, %c0_56] : memref<1x1x32xf32, #tpu.memory_space<vmem>>, vector<1x1x32xf32>
    %98 = vector.shape_cast %97 : vector<1x1x32xf32> to vector<1x32xf32>
    %c0_57 = arith.constant 0 : index
    %c0_58 = arith.constant 0 : index
    %c0_59 = arith.constant 0 : index
    %99 = vector.load %arg16[%c0_57, %c0_58, %c0_59] : memref<1x1x32xf32, #tpu.memory_space<vmem>>, vector<1x1x32xf32>
    %100 = vector.shape_cast %99 : vector<1x1x32xf32> to vector<1x32xf32>
    %cst_60 = arith.constant dense<0.000000e+00> : vector<8xf32>
    %101 = vector.multi_reduction <add>, %96, %cst_60 [1] : vector<8x32xf32> to vector<8xf32>
    %102 = vector.shape_cast %101 : vector<8xf32> to vector<8x1xf32>
    %cst_61 = arith.constant 3.200000e+01 : f32
    %103 = vector.broadcast %cst_61 : f32 to vector<8x1xf32>
    %104 = arith.divf %102, %103 : vector<8x1xf32>
    %105 = vector.broadcast %104 : vector<8x1xf32> to vector<8x32xf32>
    %106 = arith.subf %96, %105 : vector<8x32xf32>
    %107 = arith.mulf %106, %106 : vector<8x32xf32>
    %cst_62 = arith.constant dense<0.000000e+00> : vector<8xf32>
    %108 = vector.multi_reduction <add>, %107, %cst_62 [1] : vector<8x32xf32> to vector<8xf32>
    %109 = vector.shape_cast %108 : vector<8xf32> to vector<8x1xf32>
    %cst_63 = arith.constant 3.200000e+01 : f32
    %110 = vector.broadcast %cst_63 : f32 to vector<8x1xf32>
    %111 = arith.divf %109, %110 : vector<8x1xf32>
    %112 = vector.broadcast %104 : vector<8x1xf32> to vector<8x32xf32>
    %113 = arith.subf %96, %112 : vector<8x32xf32>
    %cst_64 = arith.constant 9.99999997E-7 : f32
    %114 = vector.broadcast %cst_64 : f32 to vector<8x1xf32>
    %115 = arith.addf %111, %114 : vector<8x1xf32>
    %116 = math.rsqrt %115 : vector<8x1xf32>
    %117 = vector.broadcast %116 : vector<8x1xf32> to vector<8x32xf32>
    %118 = arith.mulf %113, %117 : vector<8x32xf32>
    %119 = vector.broadcast %98 : vector<1x32xf32> to vector<8x32xf32>
    %120 = arith.mulf %118, %119 : vector<8x32xf32>
    %121 = vector.broadcast %100 : vector<1x32xf32> to vector<8x32xf32>
    %122 = arith.addf %120, %121 : vector<8x32xf32>
    %c0_65 = arith.constant 0 : index
    %c0_66 = arith.constant 0 : index
    %123 = vector.load %arg18[%c0_65, %c0_66] : memref<8x32xf32, #tpu.memory_space<vmem>>, vector<8x32xf32>
    tpu.vector_store %arg18[%c0_65, %c0_66], %122 {strides = array<i32>} : memref<8x32xf32, #tpu.memory_space<vmem>>, vector<8x32xf32>,
    %c1_i32 = arith.constant 1 : i32
    %124 = arith.cmpi eq, %arg1, %c1_i32 : i32
    %125 = arith.extui %124 : i1 to i32
    %c0_i32_67 = arith.constant 0 : i32
    %126 = arith.cmpi ne, %125, %c0_i32_67 : i32
    scf.if %126 {
      %127 = vector.shape_cast %122 : vector<8x32xf32> to vector<1x8x32xf32>
      %128 = arith.truncf %127 : vector<1x8x32xf32> to vector<1x8x32xbf16>
      %c0_68 = arith.constant 0 : index
      %c0_69 = arith.constant 0 : index
      %c0_70 = arith.constant 0 : index
      %129 = vector.load %arg17[%c0_68, %c0_69, %c0_70] : memref<1x8x32xbf16, #tpu.memory_space<vmem>>, vector<1x8x32xbf16>
      tpu.vector_store %arg17[%c0_68, %c0_69, %c0_70], %128 {strides = array<i32>} : memref<1x8x32xbf16, #tpu.memory_space<vmem>>, vector<1x8x32xbf16>,
    } else {
    }
    return
  }
  func.func @transform_0(%arg0: i32, %arg1: i32) -> (i32, i32, i32) {
    %c0_i32 = arith.constant 0 : i32
    %c0_i32_0 = arith.constant 0 : i32
    %c0_i32_1 = arith.constant 0 : i32
    return %arg0, %c0_i32, %c0_i32_0 : i32, i32, i32
  }
  func.func @transform_1(%arg0: i32, %arg1: i32) -> (i32, i32, i32) {
    %c0_i32 = arith.constant 0 : i32
    %c0_i32_0 = arith.constant 0 : i32
    %c0_i32_1 = arith.constant 0 : i32
    %c0_i32_2 = arith.constant 0 : i32
    return %c0_i32, %c0_i32_0, %c0_i32_1 : i32, i32, i32
  }
  func.func @transform_2(%arg0: i32, %arg1: i32) -> (i32, i32, i32) {
    %c0_i32 = arith.constant 0 : i32
    %c0_i32_0 = arith.constant 0 : i32
    %c0_i32_1 = arith.constant 0 : i32
    return %arg0, %c0_i32, %c0_i32_0 : i32, i32, i32
  }
  func.func @transform_3(%arg0: i32, %arg1: i32) -> (i32, i32) {
    %c0_i32 = arith.constant 0 : i32
    %c0_i32_0 = arith.constant 0 : i32
    %c0_i32_1 = arith.constant 0 : i32
    return %c0_i32, %c0_i32_0 : i32, i32
  }
  func.func @transform_4(%arg0: i32, %arg1: i32) -> (i32, i32) {
    %c0_i32 = arith.constant 0 : i32
    %c0_i32_0 = arith.constant 0 : i32
    %c0_i32_1 = arith.constant 0 : i32
    return %c0_i32, %c0_i32_0 : i32, i32
  }
  func.func @transform_5(%arg0: i32, %arg1: i32) -> (i32, i32, i32, i32) {
    %c0_i32 = arith.constant 0 : i32
    %c0_i32_0 = arith.constant 0 : i32
    %c0_i32_1 = arith.constant 0 : i32
    %c0_i32_2 = arith.constant 0 : i32
    return %arg1, %c0_i32, %c0_i32_0, %c0_i32_1 : i32, i32, i32, i32
  }
  func.func @transform_6(%arg0: i32, %arg1: i32) -> (i32, i32, i32) {
    %c0_i32 = arith.constant 0 : i32
    %c0_i32_0 = arith.constant 0 : i32
    %c0_i32_1 = arith.constant 0 : i32
    return %arg1, %c0_i32, %c0_i32_0 : i32, i32, i32
  }
  func.func @transform_7(%arg0: i32, %arg1: i32) -> (i32, i32, i32) {
    %c0_i32 = arith.constant 0 : i32
    %c0_i32_0 = arith.constant 0 : i32
    %c0_i32_1 = arith.constant 0 : i32
    return %arg1, %c0_i32, %c0_i32_0 : i32, i32, i32
  }
  func.func @transform_8(%arg0: i32, %arg1: i32) -> (i32, i32, i32) {
    %c0_i32 = arith.constant 0 : i32
    %c0_i32_0 = arith.constant 0 : i32
    %c0_i32_1 = arith.constant 0 : i32
    return %arg1, %c0_i32, %c0_i32_0 : i32, i32, i32
  }
  func.func @transform_9(%arg0: i32, %arg1: i32) -> (i32, i32, i32) {
    %c0_i32 = arith.constant 0 : i32
    %c0_i32_0 = arith.constant 0 : i32
    %c0_i32_1 = arith.constant 0 : i32
    return %arg1, %c0_i32, %c0_i32_0 : i32, i32, i32
  }
  func.func @transform_10(%arg0: i32, %arg1: i32) -> (i32, i32, i32) {
    %c0_i32 = arith.constant 0 : i32
    %c0_i32_0 = arith.constant 0 : i32
    %c0_i32_1 = arith.constant 0 : i32
    return %arg1, %c0_i32, %c0_i32_0 : i32, i32, i32
  }
  func.func @transform_11(%arg0: i32, %arg1: i32) -> (i32, i32, i32) {
    %c0_i32 = arith.constant 0 : i32
    %c0_i32_0 = arith.constant 0 : i32
    %c0_i32_1 = arith.constant 0 : i32
    return %arg1, %c0_i32, %c0_i32_0 : i32, i32, i32
  }
  func.func @transform_12(%arg0: i32, %arg1: i32) -> (i32, i32, i32) {
    %c0_i32 = arith.constant 0 : i32
    %c0_i32_0 = arith.constant 0 : i32
    %c0_i32_1 = arith.constant 0 : i32
    return %arg1, %c0_i32, %c0_i32_0 : i32, i32, i32
  }
  func.func @transform_13(%arg0: i32, %arg1: i32) -> (i32, i32, i32) {
    %c0_i32 = arith.constant 0 : i32
    %c0_i32_0 = arith.constant 0 : i32
    %c0_i32_1 = arith.constant 0 : i32
    return %arg1, %c0_i32, %c0_i32_0 : i32, i32, i32
  }
  func.func @transform_14(%arg0: i32, %arg1: i32) -> (i32, i32, i32) {
    %c0_i32 = arith.constant 0 : i32
    %c0_i32_0 = arith.constant 0 : i32
    %c0_i32_1 = arith.constant 0 : i32
    return %arg1, %c0_i32, %c0_i32_0 : i32, i32, i32
  }
  func.func @transform_15(%arg0: i32, %arg1: i32) -> (i32, i32, i32) {
    %c0_i32 = arith.constant 0 : i32
    %c0_i32_0 = arith.constant 0 : i32
    %c0_i32_1 = arith.constant 0 : i32
    return %arg0, %c0_i32, %c0_i32_0 : i32, i32, i32
  }
}

</mosaic_0001>

<llo_original>
// kernel: tpu_custom_call.1
$region0: #{tpu_custom_call.1}
  #allocation0 [shape = 'u32[]', space=smem, size = 0x4, offset = 0x4, fixed_abs, tag = 'smem constant byte address 0x4 - core index']
  #allocation1 [shape = 'u32[72,128]{1,0:T(1,128)}', space=vmem, size = 0x9000, scoped, tag = 'internal scratch']
  #allocation2 [shape = 'f32[8,32]{1,0:T(8,128)}', space=vmem, size = 0x1000, scoped, tag = 'scratch operand']
  %s0 = inlined_call_operand.hbm [shape: f32[2,8,32], index: 0, kind: input, shape index: {}]
  %s1 = inlined_call_operand.hbm [shape: f32[1,8,32], index: 1, kind: input, shape index: {}]
  %s2 = inlined_call_operand.vmem [shape: f32[2,1,8], index: 2, kind: input, shape index: {}]
  %s3 = inlined_call_operand.hbm [shape: f32[1,32], index: 3, kind: input, shape index: {}]
  %s4 = inlined_call_operand.hbm [shape: f32[1,32], index: 4, kind: input, shape index: {}]
  %s5 = inlined_call_operand.vmem [shape: bf16[2,3,32,32], index: 5, kind: input, shape index: {}]
  %s6 = inlined_call_operand.vmem [shape: bf16[2,32,32], index: 6, kind: input, shape index: {}]
  %s7 = inlined_call_operand.vmem [shape: f32[2,1,32], index: 7, kind: input, shape index: {}]
  %s8 = inlined_call_operand.vmem [shape: f32[2,1,32], index: 8, kind: input, shape index: {}]
  %s9 = inlined_call_operand.vmem [shape: bf16[2,32,128], index: 9, kind: input, shape index: {}]
  %s10 = inlined_call_operand.vmem [shape: f32[2,1,128], index: 10, kind: input, shape index: {}]
  %s11 = inlined_call_operand.vmem [shape: bf16[2,128,32], index: 11, kind: input, shape index: {}]
  %s12 = inlined_call_operand.vmem [shape: f32[2,1,32], index: 12, kind: input, shape index: {}]
  %s13 = inlined_call_operand.hbm [shape: f32[2,1,32], index: 13, kind: input, shape index: {}]
  %s14 = inlined_call_operand.vmem [shape: f32[2,1,32], index: 14, kind: input, shape index: {}]
  %s15 = inlined_call_operand.hbm [shape: bf16[2,8,32], index: 15, kind: output, shape index: {}]
  %s16 = sld [smem:[#allocation0]]
  $region121: #{tpu_custom_call.1} parent=0
    _
  %s18 = ssub.s32 1, %s16
  %s19 = scalar_select 0, %s18, %s16
  $region1: #{tpu_custom_call.1} parent=0
    #allocation3 [shape = 'u8[8192]{0}', space=vmem, size = 0x2000, scoped, tag = 'input window, operand 0']
    #allocation4 [shape = 's32[2]{0}', space=sflag, size = 0x8, scoped, tag = 'scoped memory for tpu_custom_call.1']
    #allocation5 [shape = 's32[2]{0}', space=sflag, size = 0x8, scoped, tag = 'scoped memory for tpu_custom_call.1']
    #allocation6 [shape = 'u8[4096]{0}', space=vmem, size = 0x1000, scoped, tag = 'input window, operand 1, single buffered']
    #allocation7 [shape = 's32[1]{0}', space=sflag, size = 0x4, scoped, tag = 'scoped memory for tpu_custom_call.1']
    #allocation8 [shape = 'u8[512]{0}', space=vmem, size = 0x400, scoped, tag = 'input window, operand 3, single buffered']
    #allocation9 [shape = 'u8[512]{0}', space=vmem, size = 0x400, scoped, tag = 'input window, operand 4, single buffered']
    #allocation10 [shape = 's32[1]{0}', space=sflag, size = 0x4, scoped, tag = 'scoped memory for tpu_custom_call.1']
    #allocation11 [shape = 'u8[1024]{0}', space=vmem, size = 0x400, scoped, tag = 'input window, operand 13']
    #allocation12 [shape = 'u8[4096]{0}', space=vmem, size = 0x1000, scoped, tag = 'output window, operand 0']
    %20 = vsyncpa [#allocation4], 0
    %s21 = scalar_lea.sflag [#allocation4], 1
    %22 = vsyncpa %s21, 0
    %23 = vsyncpa [#allocation7], 0
    %24 = vsyncpa [#allocation10], 0
    %25 = vsyncpa [#allocation5], 0
    %s26 = scalar_lea.sflag [#allocation5], 1
    %27 = vsyncpa %s26, 0
    loop: start=0, step=1, limit=6
    $region2: #{tpu_custom_call.1} parent=1 // loop_pre_header
      _
    $region3: #{tpu_custom_call.1} parent=1 // loop_header
      %s29 = sphi 0, %s33
      %p30 = scmp.ge.s32.totalorder %s29, 6
      %s36 = sphi 0, %s48
      %s37 = sphi 0, %s44
      %s38 = sphi 0, %s36
      %s39 = sphi 0, %s37
      %s40 = sphi 0, %s38
      %s41 = sphi 0, %s39
      %s51 = sphi 0, %s53
      %s54 = sphi 0, %s51
      %s55 = sphi 0, %s54
      %s71 = sphi 0, %s55
      %s75 = sphi 0, %s75
      %s77 = sphi 0, %s75
      %s78 = sphi 0, %s77
      %s92 = sphi 0, %s78
      %s98 = sphi 0, %s100
      %s101 = sphi 0, %s98
      %s102 = sphi 0, %s101
      %s118 = sphi 0, %s102
      %s122 = sphi 0, %s122
      %s124 = sphi 0, %s122
      %s125 = sphi 0, %s124
      %s139 = sphi 0, %s125
      %s143 = sphi 0, %s143
      %s145 = sphi 0, %s143
      %s146 = sphi 0, %s145
      %s160 = sphi 0, %s146
      %s166 = sphi 0, %s168
      %s169 = sphi 0, %s166
      %s170 = sphi 0, %s169
      %s186 = sphi 0, %s170
      %s192 = sphi 0, %s194
      %s195 = sphi 0, %s192
      %s196 = sphi 0, %s195
      %s212 = sphi 0, %s196
      %s218 = sphi 0, %s220
      %s221 = sphi 0, %s218
      %s222 = sphi 0, %s221
      %s238 = sphi 0, %s222
      %s244 = sphi 0, %s246
      %s247 = sphi 0, %s244
      %s248 = sphi 0, %s247
      %s264 = sphi 0, %s248
      %s270 = sphi 0, %s272
      %s273 = sphi 0, %s270
      %s274 = sphi 0, %s273
      %s290 = sphi 0, %s274
      %s296 = sphi 0, %s298
      %s299 = sphi 0, %s296
      %s300 = sphi 0, %s299
      %s316 = sphi 0, %s300
      %s322 = sphi 0, %s324
      %s325 = sphi 0, %s322
      %s326 = sphi 0, %s325
      %s342 = sphi 0, %s326
      %s348 = sphi 0, %s350
      %s351 = sphi 0, %s348
      %s352 = sphi 0, %s351
      %s368 = sphi 0, %s352
      %s374 = sphi 0, %s376
      %s377 = sphi 0, %s374
      %s378 = sphi 0, %s377
      %s394 = sphi 0, %s378
      %s400 = sphi 0, %s402
      %s403 = sphi 0, %s400
      %s404 = sphi 0, %s403
      %s420 = sphi 0, %s404
      %s426 = sphi 0, %s428
      %s429 = sphi 0, %s426
      %s430 = sphi 0, %s429
      %s446 = sphi 0, %s430
    $region4: #{tpu_custom_call.1} parent=1 // loop_header_branch
      %32 = sbr.rel (%p30) target = $region8
    $region5: #{tpu_custom_call.1} parent=1 // loop_body
      %s34 = ssub.s32 %s29, 1
      %s35 = ssub.s32 %s29, 2
      %s42 = sadd.s32 1, %s37
      %p43 = scmp.ge.s32.totalorder %s42, 2
      %s44 = scalar_select %p43, 0, %s42
      %s45 = sadd.s32 1, %s36
      %s46 = scalar_select %p43, %s45, %s36
      %p47 = scmp.ge.s32.totalorder %s46, 2
      %s48 = scalar_select %p47, 0, %s46
      %s49 = ssub.s32 %s36, %s48
      %p50 = scmp.eq.s32.totalorder %s49, 0
      %s52 = sadd.s32 %s51, 1
      %s53 = scalar_select %p50, %s51, %s52
      %p56 = pneg %p50
      %p57 = scmp.eq.s32.totalorder %s29, 3
      %p58 = por %p56, %p57
      %p59 = scmp.ne.s32.totalorder %s51, %s54
      %p60 = scmp.eq.s32.totalorder %s29, 0
      %p61 = por %p59, %p60
      %p62 = scmp.ne.s32.totalorder %s51, %s54
      %p63 = scmp.eq.s32.totalorder %s34, 3
      %p64 = por %p62, %p63
      %p65 = scmp.ne.s32.totalorder %s54, %s55
      %p66 = scmp.eq.s32.totalorder %s34, 0
      %p67 = por %p65, %p66
      %p68 = scmp.ne.s32.totalorder %s54, %s55
      %p69 = scmp.eq.s32.totalorder %s35, 3
      %p70 = por %p68, %p69
      %p72 = scmp.ne.s32.totalorder %s55, %s71
      %p73 = scmp.eq.s32.totalorder %s35, 0
      %p74 = por %p72, %p73
      %s76 = sadd.s32 %s75, 1
      %p79 = scmp.eq.s32.totalorder %s29, 3
      %p80 = scmp.ne.s32.totalorder %s75, %s77
      %p81 = scmp.eq.s32.totalorder %s29, 0
      %p82 = por %p80, %p81
      %p83 = scmp.ne.s32.totalorder %s75, %s77
      %p84 = scmp.eq.s32.totalorder %s34, 3
      %p85 = por %p83, %p84
      %p86 = scmp.ne.s32.totalorder %s77, %s78
      %p87 = scmp.eq.s32.totalorder %s34, 0
      %p88 = por %p86, %p87
      %p89 = scmp.ne.s32.totalorder %s77, %s78
      %p90 = scmp.eq.s32.totalorder %s35, 3
      %p91 = por %p89, %p90
      %p93 = scmp.ne.s32.totalorder %s78, %s92
      %p94 = scmp.eq.s32.totalorder %s35, 0
      %p95 = por %p93, %p94
      %s96 = ssub.s32 %s36, %s48
      %p97 = scmp.eq.s32.totalorder %s96, 0
      %s99 = sadd.s32 %s98, 1
      %s100 = scalar_select %p97, %s98, %s99
      %p103 = pneg %p97
      %p104 = scmp.eq.s32.totalorder %s29, 3
      %p105 = por %p103, %p104
      %p106 = scmp.ne.s32.totalorder %s98, %s101
      %p107 = scmp.eq.s32.totalorder %s29, 0
      %p108 = por %p106, %p107
      %p109 = scmp.ne.s32.totalorder %s98, %s101
      %p110 = scmp.eq.s32.totalorder %s34, 3
      %p111 = por %p109, %p110
      %p112 = scmp.ne.s32.totalorder %s101, %s102
      %p113 = scmp.eq.s32.totalorder %s34, 0
      %p114 = por %p112, %p113
      %p115 = scmp.ne.s32.totalorder %s101, %s102
      %p116 = scmp.eq.s32.totalorder %s35, 3
      %p117 = por %p115, %p116
      %p119 = scmp.ne.s32.totalorder %s102, %s118
      %p120 = scmp.eq.s32.totalorder %s35, 0
      %p121 = por %p119, %p120
      %s123 = sadd.s32 %s122, 1
      %p126 = scmp.eq.s32.totalorder %s29, 3
      %p127 = scmp.ne.s32.totalorder %s122, %s124
      %p128 = scmp.eq.s32.totalorder %s29, 0
      %p129 = por %p127, %p128
      %p130 = scmp.ne.s32.totalorder %s122, %s124
      %p131 = scmp.eq.s32.totalorder %s34, 3
      %p132 = por %p130, %p131
      %p133 = scmp.ne.s32.totalorder %s124, %s125
      %p134 = scmp.eq.s32.totalorder %s34, 0
      %p135 = por %p133, %p134
      %p136 = scmp.ne.s32.totalorder %s124, %s125
      %p137 = scmp.eq.s32.totalorder %s35, 3
      %p138 = por %p136, %p137
      %p140 = scmp.ne.s32.totalorder %s125, %s139
      %p141 = scmp.eq.s32.totalorder %s35, 0
      %p142 = por %p140, %p141
      %s144 = sadd.s32 %s143, 1
      %p147 = scmp.eq.s32.totalorder %s29, 3
      %p148 = scmp.ne.s32.totalorder %s143, %s145
      %p149 = scmp.eq.s32.totalorder %s29, 0
      %p150 = por %p148, %p149
      %p151 = scmp.ne.s32.totalorder %s143, %s145
      %p152 = scmp.eq.s32.totalorder %s34, 3
      %p153 = por %p151, %p152
      %p154 = scmp.ne.s32.totalorder %s145, %s146
      %p155 = scmp.eq.s32.totalorder %s34, 0
      %p156 = por %p154, %p155
      %p157 = scmp.ne.s32.totalorder %s145, %s146
      %p158 = scmp.eq.s32.totalorder %s35, 3
      %p159 = por %p157, %p158
      %p161 = scmp.ne.s32.totalorder %s146, %s160
      %p162 = scmp.eq.s32.totalorder %s35, 0
      %p163 = por %p161, %p162
      %s164 = ssub.s32 %s37, %s44
      %p165 = scmp.eq.s32.totalorder %s164, 0
      %s167 = sadd.s32 %s166, 1
      %s168 = scalar_select %p165, %s166, %s167
      %p171 = pneg %p165
      %p172 = scmp.eq.s32.totalorder %s29, 3
      %p173 = por %p171, %p172
      %p174 = scmp.ne.s32.totalorder %s166, %s169
      %p175 = scmp.eq.s32.totalorder %s29, 0
      %p176 = por %p174, %p175
      %p177 = scmp.ne.s32.totalorder %s166, %s169
      %p178 = scmp.eq.s32.totalorder %s34, 3
      %p179 = por %p177, %p178
      %p180 = scmp.ne.s32.totalorder %s169, %s170
      %p181 = scmp.eq.s32.totalorder %s34, 0
      %p182 = por %p180, %p181
      %p183 = scmp.ne.s32.totalorder %s169, %s170
      %p184 = scmp.eq.s32.totalorder %s35, 3
      %p185 = por %p183, %p184
      %p187 = scmp.ne.s32.totalorder %s170, %s186
      %p188 = scmp.eq.s32.totalorder %s35, 0
      %p189 = por %p187, %p188
      %s190 = ssub.s32 %s37, %s44
      %p191 = scmp.eq.s32.totalorder %s190, 0
      %s193 = sadd.s32 %s192, 1
      %s194 = scalar_select %p191, %s192, %s193
      %p197 = pneg %p191
      %p198 = scmp.eq.s32.totalorder %s29, 3
      %p199 = por %p197, %p198
      %p200 = scmp.ne.s32.totalorder %s192, %s195
      %p201 = scmp.eq.s32.totalorder %s29, 0
      %p202 = por %p200, %p201
      %p203 = scmp.ne.s32.totalorder %s192, %s195
      %p204 = scmp.eq.s32.totalorder %s34, 3
      %p205 = por %p203, %p204
      %p206 = scmp.ne.s32.totalorder %s195, %s196
      %p207 = scmp.eq.s32.totalorder %s34, 0
      %p208 = por %p206, %p207
      %p209 = scmp.ne.s32.totalorder %s195, %s196
      %p210 = scmp.eq.s32.totalorder %s35, 3
      %p211 = por %p209, %p210
      %p213 = scmp.ne.s32.totalorder %s196, %s212
      %p214 = scmp.eq.s32.totalorder %s35, 0
      %p215 = por %p213, %p214
      %s216 = ssub.s32 %s37, %s44
      %p217 = scmp.eq.s32.totalorder %s216, 0
      %s219 = sadd.s32 %s218, 1
      %s220 = scalar_select %p217, %s218, %s219
      %p223 = pneg %p217
      %p224 = scmp.eq.s32.totalorder %s29, 3
      %p225 = por %p223, %p224
      %p226 = scmp.ne.s32.totalorder %s218, %s221
      %p227 = scmp.eq.s32.totalorder %s29, 0
      %p228 = por %p226, %p227
      %p229 = scmp.ne.s32.totalorder %s218, %s221
      %p230 = scmp.eq.s32.totalorder %s34, 3
      %p231 = por %p229, %p230
      %p232 = scmp.ne.s32.totalorder %s221, %s222
      %p233 = scmp.eq.s32.totalorder %s34, 0
      %p234 = por %p232, %p233
      %p235 = scmp.ne.s32.totalorder %s221, %s222
      %p236 = scmp.eq.s32.totalorder %s35, 3
      %p237 = por %p235, %p236
      %p239 = scmp.ne.s32.totalorder %s222, %s238
      %p240 = scmp.eq.s32.totalorder %s35, 0
      %p241 = por %p239, %p240
      %s242 = ssub.s32 %s37, %s44
      %p243 = scmp.eq.s32.totalorder %s242, 0
      %s245 = sadd.s32 %s244, 1
      %s246 = scalar_select %p243, %s244, %s245
      %p249 = pneg %p243
      %p250 = scmp.eq.s32.totalorder %s29, 3
      %p251 = por %p249, %p250
      %p252 = scmp.ne.s32.totalorder %s244, %s247
      %p253 = scmp.eq.s32.totalorder %s29, 0
      %p254 = por %p252, %p253
      %p255 = scmp.ne.s32.totalorder %s244, %s247
      %p256 = scmp.eq.s32.totalorder %s34, 3
      %p257 = por %p255, %p256
      %p258 = scmp.ne.s32.totalorder %s247, %s248
      %p259 = scmp.eq.s32.totalorder %s34, 0
      %p260 = por %p258, %p259
      %p261 = scmp.ne.s32.totalorder %s247, %s248
      %p262 = scmp.eq.s32.totalorder %s35, 3
      %p263 = por %p261, %p262
      %p265 = scmp.ne.s32.totalorder %s248, %s264
      %p266 = scmp.eq.s32.totalorder %s35, 0
      %p267 = por %p265, %p266
      %s268 = ssub.s32 %s37, %s44
      %p269 = scmp.eq.s32.totalorder %s268, 0
      %s271 = sadd.s32 %s270, 1
      %s272 = scalar_select %p269, %s270, %s271
      %p275 = pneg %p269
      %p276 = scmp.eq.s32.totalorder %s29, 3
      %p277 = por %p275, %p276
      %p278 = scmp.ne.s32.totalorder %s270, %s273
      %p279 = scmp.eq.s32.totalorder %s29, 0
      %p280 = por %p278, %p279
      %p281 = scmp.ne.s32.totalorder %s270, %s273
      %p282 = scmp.eq.s32.totalorder %s34, 3
      %p283 = por %p281, %p282
      %p284 = scmp.ne.s32.totalorder %s273, %s274
      %p285 = scmp.eq.s32.totalorder %s34, 0
      %p286 = por %p284, %p285
      %p287 = scmp.ne.s32.totalorder %s273, %s274
      %p288 = scmp.eq.s32.totalorder %s35, 3
      %p289 = por %p287, %p288
      %p291 = scmp.ne.s32.totalorder %s274, %s290
      %p292 = scmp.eq.s32.totalorder %s35, 0
      %p293 = por %p291, %p292
      %s294 = ssub.s32 %s37, %s44
      %p295 = scmp.eq.s32.totalorder %s294, 0
      %s297 = sadd.s32 %s296, 1
      %s298 = scalar_select %p295, %s296, %s297
      %p301 = pneg %p295
      %p302 = scmp.eq.s32.totalorder %s29, 3
      %p303 = por %p301, %p302
      %p304 = scmp.ne.s32.totalorder %s296, %s299
      %p305 = scmp.eq.s32.totalorder %s29, 0
      %p306 = por %p304, %p305
      %p307 = scmp.ne.s32.totalorder %s296, %s299
      %p308 = scmp.eq.s32.totalorder %s34, 3
      %p309 = por %p307, %p308
      %p310 = scmp.ne.s32.totalorder %s299, %s300
      %p311 = scmp.eq.s32.totalorder %s34, 0
      %p312 = por %p310, %p311
      %p313 = scmp.ne.s32.totalorder %s299, %s300
      %p314 = scmp.eq.s32.totalorder %s35, 3
      %p315 = por %p313, %p314
      %p317 = scmp.ne.s32.totalorder %s300, %s316
      %p318 = scmp.eq.s32.totalorder %s35, 0
      %p319 = por %p317, %p318
      %s320 = ssub.s32 %s37, %s44
      %p321 = scmp.eq.s32.totalorder %s320, 0
      %s323 = sadd.s32 %s322, 1
      %s324 = scalar_select %p321, %s322, %s323
      %p327 = pneg %p321
      %p328 = scmp.eq.s32.totalorder %s29, 3
      %p329 = por %p327, %p328
      %p330 = scmp.ne.s32.totalorder %s322, %s325
      %p331 = scmp.eq.s32.totalorder %s29, 0
      %p332 = por %p330, %p331
      %p333 = scmp.ne.s32.totalorder %s322, %s325
      %p334 = scmp.eq.s32.totalorder %s34, 3
      %p335 = por %p333, %p334
      %p336 = scmp.ne.s32.totalorder %s325, %s326
      %p337 = scmp.eq.s32.totalorder %s34, 0
      %p338 = por %p336, %p337
      %p339 = scmp.ne.s32.totalorder %s325, %s326
      %p340 = scmp.eq.s32.totalorder %s35, 3
      %p341 = por %p339, %p340
      %p343 = scmp.ne.s32.totalorder %s326, %s342
      %p344 = scmp.eq.s32.totalorder %s35, 0
      %p345 = por %p343, %p344
      %s346 = ssub.s32 %s37, %s44
      %p347 = scmp.eq.s32.totalorder %s346, 0
      %s349 = sadd.s32 %s348, 1
      %s350 = scalar_select %p347, %s348, %s349
      %p353 = pneg %p347
      %p354 = scmp.eq.s32.totalorder %s29, 3
      %p355 = por %p353, %p354
      %p356 = scmp.ne.s32.totalorder %s348, %s351
      %p357 = scmp.eq.s32.totalorder %s29, 0
      %p358 = por %p356, %p357
      %p359 = scmp.ne.s32.totalorder %s348, %s351
      %p360 = scmp.eq.s32.totalorder %s34, 3
      %p361 = por %p359, %p360
      %p362 = scmp.ne.s32.totalorder %s351, %s352
      %p363 = scmp.eq.s32.totalorder %s34, 0
      %p364 = por %p362, %p363
      %p365 = scmp.ne.s32.totalorder %s351, %s352
      %p366 = scmp.eq.s32.totalorder %s35, 3
      %p367 = por %p365, %p366
      %p369 = scmp.ne.s32.totalorder %s352, %s368
      %p370 = scmp.eq.s32.totalorder %s35, 0
      %p371 = por %p369, %p370
      %s372 = ssub.s32 %s37, %s44
      %p373 = scmp.eq.s32.totalorder %s372, 0
      %s375 = sadd.s32 %s374, 1
      %s376 = scalar_select %p373, %s374, %s375
      %p379 = pneg %p373
      %p380 = scmp.eq.s32.totalorder %s29, 3
      %p381 = por %p379, %p380
      %p382 = scmp.ne.s32.totalorder %s374, %s377
      %p383 = scmp.eq.s32.totalorder %s29, 0
      %p384 = por %p382, %p383
      %p385 = scmp.ne.s32.totalorder %s374, %s377
      %p386 = scmp.eq.s32.totalorder %s34, 3
      %p387 = por %p385, %p386
      %p388 = scmp.ne.s32.totalorder %s377, %s378
      %p389 = scmp.eq.s32.totalorder %s34, 0
      %p390 = por %p388, %p389
      %p391 = scmp.ne.s32.totalorder %s377, %s378
      %p392 = scmp.eq.s32.totalorder %s35, 3
      %p393 = por %p391, %p392
      %p395 = scmp.ne.s32.totalorder %s378, %s394
      %p396 = scmp.eq.s32.totalorder %s35, 0
      %p397 = por %p395, %p396
      %s398 = ssub.s32 %s37, %s44
      %p399 = scmp.eq.s32.totalorder %s398, 0
      %s401 = sadd.s32 %s400, 1
      %s402 = scalar_select %p399, %s400, %s401
      %p405 = pneg %p399
      %p406 = scmp.eq.s32.totalorder %s29, 3
      %p407 = por %p405, %p406
      %p408 = scmp.ne.s32.totalorder %s400, %s403
      %p409 = scmp.eq.s32.totalorder %s29, 0
      %p410 = por %p408, %p409
      %p411 = scmp.ne.s32.totalorder %s400, %s403
      %p412 = scmp.eq.s32.totalorder %s34, 3
      %p413 = por %p411, %p412
      %p414 = scmp.ne.s32.totalorder %s403, %s404
      %p415 = scmp.eq.s32.totalorder %s34, 0
      %p416 = por %p414, %p415
      %p417 = scmp.ne.s32.totalorder %s403, %s404
      %p418 = scmp.eq.s32.totalorder %s35, 3
      %p419 = por %p417, %p418
      %p421 = scmp.ne.s32.totalorder %s404, %s420
      %p422 = scmp.eq.s32.totalorder %s35, 0
      %p423 = por %p421, %p422
      %s424 = ssub.s32 %s36, %s48
      %p425 = scmp.eq.s32.totalorder %s424, 0
      %s427 = sadd.s32 %s426, 1
      %s428 = scalar_select %p425, %s426, %s427
      %p431 = pneg %p425
      %p432 = scmp.eq.s32.totalorder %s29, 3
      %p433 = por %p431, %p432
      %p434 = scmp.ne.s32.totalorder %s426, %s429
      %p435 = scmp.eq.s32.totalorder %s29, 0
      %p436 = por %p434, %p435
      %p437 = scmp.ne.s32.totalorder %s426, %s429
      %p438 = scmp.eq.s32.totalorder %s34, 3
      %p439 = por %p437, %p438
      %p440 = scmp.ne.s32.totalorder %s429, %s430
      %p441 = scmp.eq.s32.totalorder %s34, 0
      %p442 = por %p440, %p441
      %p443 = scmp.ne.s32.totalorder %s429, %s430
      %p444 = scmp.eq.s32.totalorder %s35, 3
      %p445 = por %p443, %p444
      %p447 = scmp.ne.s32.totalorder %s430, %s446
      %p448 = scmp.eq.s32.totalorder %s35, 0
      %p449 = por %p447, %p448
      %p450 = scmp.le.s32.totalorder 1, %s29
      %p451 = scmp.lt.s32.totalorder %s29, 5
      %p452 = pnand %p450, %p451
      %p453 = pneg %p452
      // Predicated region
      $region9: #{tpu_custom_call.1} parent=5 // pred_check
        _
      $region10: #{tpu_custom_call.1} parent=5 // pred_check_branch
        %455 = sbr.rel (%p452) target = $region12
      $region11: #{tpu_custom_call.1} parent=5 // pred_region
        %s456 = ssub.s32 %s29, 1
        // Predicated region
        $region13: #{tpu_custom_call.1} parent=11 // pred_check
          %p457 = pneg %p88
        $region14: #{tpu_custom_call.1} parent=11 // pred_check_branch
          %459 = sbr.rel (%p457) target = $region16
        $region15: #{tpu_custom_call.1} parent=11 // pred_region
          %461 = vsyncadd [#allocation7], 0
          %s463 = sshll.u32 %s1, 4
          %s464 = int_to_ptr.hbm [resolvable:$true] %s463
          %s465 = sshll.u32 [#allocation6], 4
          %s466 = int_to_ptr.vmem [resolvable:$true] %s465
          %468 = dma.hbm_to_vmem [thread:$0]  %s464, 128, %s466, [#allocation7]
        $region16: #{tpu_custom_call.1} parent=11 // pred_fallthru
          _
        // Predicated region
        $region17: #{tpu_custom_call.1} parent=11 // pred_check
          %p469 = pneg %p135
        $region18: #{tpu_custom_call.1} parent=11 // pred_check_branch
          %471 = sbr.rel (%p469) target = $region20
        $region19: #{tpu_custom_call.1} parent=11 // pred_region
          %473 = vsyncadd [#allocation7], 0
          %s475 = sshll.u32 %s3, 4
          %s476 = int_to_ptr.hbm [resolvable:$true] %s475
          %s477 = sshll.u32 [#allocation8], 4
          %s478 = int_to_ptr.vmem [resolvable:$true] %s477
          %480 = dma.hbm_to_vmem [thread:$0]  %s476, 16, %s478, [#allocation7]
        $region20: #{tpu_custom_call.1} parent=11 // pred_fallthru
          _
        // Predicated region
        $region21: #{tpu_custom_call.1} parent=11 // pred_check
          %p481 = pneg %p156
        $region22: #{tpu_custom_call.1} parent=11 // pred_check_branch
          %483 = sbr.rel (%p481) target = $region24
        $region23: #{tpu_custom_call.1} parent=11 // pred_region
          %485 = vsyncadd [#allocation10], 0
          %s487 = sshll.u32 %s4, 4
          %s488 = int_to_ptr.hbm [resolvable:$true] %s487
          %s489 = sshll.u32 [#allocation9], 4
          %s490 = int_to_ptr.vmem [resolvable:$true] %s489
          %492 = dma.hbm_to_vmem [thread:$0]  %s488, 16, %s490, [#allocation10]
        $region24: #{tpu_custom_call.1} parent=11 // pred_fallthru
          _
      $region12: #{tpu_custom_call.1} parent=5 // pred_fallthru
        _
      %p493 = scmp.lt.s32.totalorder %s29, 4
      // Predicated region
      $region25: #{tpu_custom_call.1} parent=5 // pred_check
        %p494 = pneg %p493
      $region26: #{tpu_custom_call.1} parent=5 // pred_check_branch
        %496 = sbr.rel (%p494) target = $region28
      $region27: #{tpu_custom_call.1} parent=5 // pred_region
        // Predicated region
        $region29: #{tpu_custom_call.1} parent=27 // pred_check
          %p497 = pneg %p61
        $region30: #{tpu_custom_call.1} parent=27 // pred_check_branch
          %499 = sbr.rel (%p497) target = $region32
        $region31: #{tpu_custom_call.1} parent=27 // pred_region
          %s500 = sand.u32 %s29, 1
          %s501 = scalar_lea.sflag [#allocation4], %s500
          %s502 = sand.u32 %s51, 1
          %s503 = smul.addr %s502, 8
          %s504 = scalar_lea.vmem [#allocation3], %s503
          %506 = vsyncadd %s501, 0
          %s507 = smul.addr %s36, 8
          %s508 = scalar_lea.hbm %s0, %s507
          %s510 = sshll.u32 %s508, 4
          %s511 = int_to_ptr.hbm [resolvable:$true] %s510
          %s512 = sshll.u32 %s504, 4
          %s513 = int_to_ptr.vmem [resolvable:$true] %s512
          %515 = dma.hbm_to_vmem [thread:$0]  %s511, 128, %s513, %s501
        $region32: #{tpu_custom_call.1} parent=27 // pred_fallthru
          _
        // Predicated region
        $region33: #{tpu_custom_call.1} parent=27 // pred_check
          %p516 = pneg %p108
        $region34: #{tpu_custom_call.1} parent=27 // pred_check_branch
          %518 = sbr.rel (%p516) target = $region36
        $region35: #{tpu_custom_call.1} parent=27 // pred_region
          %p519 = scmp.lt.s32.totalorder %s36, 1
          %s520 = scalar_select %p519, %s36, 1
          %s521 = scalar_lea.vmem %s2, %s520
        $region36: #{tpu_custom_call.1} parent=27 // pred_fallthru
          _
        // Predicated region
        $region37: #{tpu_custom_call.1} parent=27 // pred_check
          %p522 = pneg %p176
        $region38: #{tpu_custom_call.1} parent=27 // pred_check_branch
          %524 = sbr.rel (%p522) target = $region40
        $region39: #{tpu_custom_call.1} parent=27 // pred_region
          %p525 = scmp.lt.s32.totalorder %s37, 1
          %s526 = scalar_select %p525, %s37, 1
          %s527 = smul.addr %s526, 12
          %s528 = smul.addr %s527, 4
          %s529 = scalar_lea.vmem %s5, %s528
        $region40: #{tpu_custom_call.1} parent=27 // pred_fallthru
          _
        // Predicated region
        $region41: #{tpu_custom_call.1} parent=27 // pred_check
          %p530 = pneg %p202
        $region42: #{tpu_custom_call.1} parent=27 // pred_check_branch
          %532 = sbr.rel (%p530) target = $region44
        $region43: #{tpu_custom_call.1} parent=27 // pred_region
          %p533 = scmp.lt.s32.totalorder %s37, 1
          %s534 = scalar_select %p533, %s37, 1
          %s535 = smul.addr %s534, 4
          %s536 = smul.addr %s535, 4
          %s537 = scalar_lea.vmem %s6, %s536
        $region44: #{tpu_custom_call.1} parent=27 // pred_fallthru
          _
        // Predicated region
        $region45: #{tpu_custom_call.1} parent=27 // pred_check
          %p538 = pneg %p228
        $region46: #{tpu_custom_call.1} parent=27 // pred_check_branch
          %540 = sbr.rel (%p538) target = $region48
        $region47: #{tpu_custom_call.1} parent=27 // pred_region
          %p541 = scmp.lt.s32.totalorder %s37, 1
          %s542 = scalar_select %p541, %s37, 1
          %s543 = scalar_lea.vmem %s7, %s542
        $region48: #{tpu_custom_call.1} parent=27 // pred_fallthru
          _
        // Predicated region
        $region49: #{tpu_custom_call.1} parent=27 // pred_check
          %p544 = pneg %p254
        $region50: #{tpu_custom_call.1} parent=27 // pred_check_branch
          %546 = sbr.rel (%p544) target = $region52
        $region51: #{tpu_custom_call.1} parent=27 // pred_region
          %p547 = scmp.lt.s32.totalorder %s37, 1
          %s548 = scalar_select %p547, %s37, 1
          %s549 = scalar_lea.vmem %s8, %s548
        $region52: #{tpu_custom_call.1} parent=27 // pred_fallthru
          _
        // Predicated region
        $region53: #{tpu_custom_call.1} parent=27 // pred_check
          %p550 = pneg %p280
        $region54: #{tpu_custom_call.1} parent=27 // pred_check_branch
          %552 = sbr.rel (%p550) target = $region56
        $region55: #{tpu_custom_call.1} parent=27 // pred_region
          %p553 = scmp.lt.s32.totalorder %s37, 1
          %s554 = scalar_select %p553, %s37, 1
          %s555 = smul.addr %s554, 4
          %s556 = smul.addr %s555, 4
          %s557 = scalar_lea.vmem %s9, %s556
        $region56: #{tpu_custom_call.1} parent=27 // pred_fallthru
          _
        // Predicated region
        $region57: #{tpu_custom_call.1} parent=27 // pred_check
          %p558 = pneg %p306
        $region58: #{tpu_custom_call.1} parent=27 // pred_check_branch
          %560 = sbr.rel (%p558) target = $region60
        $region59: #{tpu_custom_call.1} parent=27 // pred_region
          %p561 = scmp.lt.s32.totalorder %s37, 1
          %s562 = scalar_select %p561, %s37, 1
          %s563 = scalar_lea.vmem %s10, %s562
        $region60: #{tpu_custom_call.1} parent=27 // pred_fallthru
          _
        // Predicated region
        $region61: #{tpu_custom_call.1} parent=27 // pred_check
          %p564 = pneg %p332
        $region62: #{tpu_custom_call.1} parent=27 // pred_check_branch
          %566 = sbr.rel (%p564) target = $region64
        $region63: #{tpu_custom_call.1} parent=27 // pred_region
          %p567 = scmp.lt.s32.totalorder %s37, 1
          %s568 = scalar_select %p567, %s37, 1
          %s569 = smul.addr %s568, 16
          %s570 = smul.addr %s569, 4
          %s571 = scalar_lea.vmem %s11, %s570
        $region64: #{tpu_custom_call.1} parent=27 // pred_fallthru
          _
        // Predicated region
        $region65: #{tpu_custom_call.1} parent=27 // pred_check
          %p572 = pneg %p358
        $region66: #{tpu_custom_call.1} parent=27 // pred_check_branch
          %574 = sbr.rel (%p572) target = $region68
        $region67: #{tpu_custom_call.1} parent=27 // pred_region
          %p575 = scmp.lt.s32.totalorder %s37, 1
          %s576 = scalar_select %p575, %s37, 1
          %s577 = scalar_lea.vmem %s12, %s576
        $region68: #{tpu_custom_call.1} parent=27 // pred_fallthru
          _
        // Predicated region
        $region69: #{tpu_custom_call.1} parent=27 // pred_check
          %p578 = pneg %p384
        $region70: #{tpu_custom_call.1} parent=27 // pred_check_branch
          %580 = sbr.rel (%p578) target = $region72
        $region71: #{tpu_custom_call.1} parent=27 // pred_region
          %s581 = sand.u32 %s29, 1
          %s582 = scalar_lea.sflag [#allocation4], %s581
          %s583 = sand.u32 %s374, 1
          %s584 = scalar_lea.vmem [#allocation11], %s583
          %586 = vsyncadd %s582, 0
          %s587 = scalar_lea.hbm %s13, %s37
          %s589 = sshll.u32 %s587, 4
          %s590 = int_to_ptr.hbm [resolvable:$true] %s589
          %s591 = sshll.u32 %s584, 4
          %s592 = int_to_ptr.vmem [resolvable:$true] %s591
          %594 = dma.hbm_to_vmem [thread:$0]  %s590, 16, %s592, %s582
        $region72: #{tpu_custom_call.1} parent=27 // pred_fallthru
          _
        // Predicated region
        $region73: #{tpu_custom_call.1} parent=27 // pred_check
          %p595 = pneg %p410
        $region74: #{tpu_custom_call.1} parent=27 // pred_check_branch
          %597 = sbr.rel (%p595) target = $region76
        $region75: #{tpu_custom_call.1} parent=27 // pred_region
          %p598 = scmp.lt.s32.totalorder %s37, 1
          %s599 = scalar_select %p598, %s37, 1
          %s600 = scalar_lea.vmem %s14, %s599
        $region76: #{tpu_custom_call.1} parent=27 // pred_fallthru
          _
      $region28: #{tpu_custom_call.1} parent=5 // pred_fallthru
        _
      %p601 = scmp.le.s32.totalorder 1, %s29
      %p602 = scmp.lt.s32.totalorder %s29, 5
      %p603 = pnand %p601, %p602
      %p604 = pneg %p603
      // Predicated region
      $region77: #{tpu_custom_call.1} parent=5 // pred_check
        _
      $region78: #{tpu_custom_call.1} parent=5 // pred_check_branch
        %606 = sbr.rel (%p603) target = $region80
      $region79: #{tpu_custom_call.1} parent=5 // pred_region
        %s607 = ssub.s32 %s29, 1
        %s608 = sand.u32 %s34, 1
        %s609 = scalar_lea.sflag [#allocation4], %s608
        %s610 = sand.u32 %s54, 1
        %s611 = smul.addr %s610, 8
        %s612 = scalar_lea.vmem [#allocation3], %s611
        // Predicated region
        $region81: #{tpu_custom_call.1} parent=79 // pred_check
          %p613 = pneg %p67
        $region82: #{tpu_custom_call.1} parent=79 // pred_check_branch
          %615 = sbr.rel (%p613) target = $region84
        $region83: #{tpu_custom_call.1} parent=79 // pred_region
          %617 = dma.done %s609, 128
        $region84: #{tpu_custom_call.1} parent=79 // pred_fallthru
          _
        // Predicated region
        $region85: #{tpu_custom_call.1} parent=79 // pred_check
          %p618 = pneg %p88
        $region86: #{tpu_custom_call.1} parent=79 // pred_check_branch
          %620 = sbr.rel (%p618) target = $region88
        $region87: #{tpu_custom_call.1} parent=79 // pred_region
          %622 = dma.done [#allocation7], 128
        $region88: #{tpu_custom_call.1} parent=79 // pred_fallthru
          _
        // Predicated region
        $region89: #{tpu_custom_call.1} parent=79 // pred_check
          %p623 = pneg %p135
        $region90: #{tpu_custom_call.1} parent=79 // pred_check_branch
          %625 = sbr.rel (%p623) target = $region92
        $region91: #{tpu_custom_call.1} parent=79 // pred_region
          %627 = dma.done [#allocation7], 16
        $region92: #{tpu_custom_call.1} parent=79 // pred_fallthru
          _
        // Predicated region
        $region93: #{tpu_custom_call.1} parent=79 // pred_check
          %p628 = pneg %p156
        $region94: #{tpu_custom_call.1} parent=79 // pred_check_branch
          %630 = sbr.rel (%p628) target = $region96
        $region95: #{tpu_custom_call.1} parent=79 // pred_region
          %632 = dma.done [#allocation10], 16
        $region96: #{tpu_custom_call.1} parent=79 // pred_fallthru
          _
        %s633 = sand.u32 %s34, 1
        %s634 = scalar_lea.sflag [#allocation4], %s633
        %s635 = sand.u32 %s377, 1
        %s636 = scalar_lea.vmem [#allocation11], %s635
        // Predicated region
        $region97: #{tpu_custom_call.1} parent=79 // pred_check
          %p637 = pneg %p390
        $region98: #{tpu_custom_call.1} parent=79 // pred_check_branch
          %639 = sbr.rel (%p637) target = $region100
        $region99: #{tpu_custom_call.1} parent=79 // pred_region
          %641 = dma.done %s634, 16
        $region100: #{tpu_custom_call.1} parent=79 // pred_fallthru
          _
        %s642 = sand.u32 %s34, 1
        %s643 = scalar_lea.sflag [#allocation4], %s642
        %s644 = sand.u32 %s54, 1
        %s645 = smul.addr %s644, 8
        %s646 = scalar_lea.vmem [#allocation3], %s645
        %p647 = pneg %p67
        %p648 = pneg %p64
        %p649 = pneg %p88
        %p650 = pneg %p85
        %p651 = scmp.lt.s32.totalorder %s38, 1
        %s652 = scalar_select %p651, %s38, 1
        %s653 = scalar_lea.vmem %s2, %s652
        %p654 = pneg %p114
        %p655 = pneg %p111
        %p656 = pneg %p135
        %p657 = pneg %p132
        %p658 = pneg %p156
        %p659 = pneg %p153
        %p660 = scmp.lt.s32.totalorder %s39, 1
        %s661 = scalar_select %p660, %s39, 1
        %s662 = smul.addr %s661, 12
        %s663 = smul.addr %s662, 4
        %s664 = scalar_lea.vmem %s5, %s663
        %p665 = pneg %p182
        %p666 = pneg %p179
        %p667 = scmp.lt.s32.totalorder %s39, 1
        %s668 = scalar_select %p667, %s39, 1
        %s669 = smul.addr %s668, 4
        %s670 = smul.addr %s669, 4
        %s671 = scalar_lea.vmem %s6, %s670
        %p672 = pneg %p208
        %p673 = pneg %p205
        %p674 = scmp.lt.s32.totalorder %s39, 1
        %s675 = scalar_select %p674, %s39, 1
        %s676 = scalar_lea.vmem %s7, %s675
        %p677 = pneg %p234
        %p678 = pneg %p231
        %p679 = scmp.lt.s32.totalorder %s39, 1
        %s680 = scalar_select %p679, %s39, 1
        %s681 = scalar_lea.vmem %s8, %s680
        %p682 = pneg %p260
        %p683 = pneg %p257
        %p684 = scmp.lt.s32.totalorder %s39, 1
        %s685 = scalar_select %p684, %s39, 1
        %s686 = smul.addr %s685, 4
        %s687 = smul.addr %s686, 4
        %s688 = scalar_lea.vmem %s9, %s687
        %p689 = pneg %p286
        %p690 = pneg %p283
        %p691 = scmp.lt.s32.totalorder %s39, 1
        %s692 = scalar_select %p691, %s39, 1
        %s693 = scalar_lea.vmem %s10, %s692
        %p694 = pneg %p312
        %p695 = pneg %p309
        %p696 = scmp.lt.s32.totalorder %s39, 1
        %s697 = scalar_select %p696, %s39, 1
        %s698 = smul.addr %s697, 16
        %s699 = smul.addr %s698, 4
        %s700 = scalar_lea.vmem %s11, %s699
        %p701 = pneg %p338
        %p702 = pneg %p335
        %p703 = scmp.lt.s32.totalorder %s39, 1
        %s704 = scalar_select %p703, %s39, 1
        %s705 = scalar_lea.vmem %s12, %s704
        %p706 = pneg %p364
        %p707 = pneg %p361
        %s708 = sand.u32 %s34, 1
        %s709 = scalar_lea.sflag [#allocation4], %s708
        %s710 = sand.u32 %s377, 1
        %s711 = scalar_lea.vmem [#allocation11], %s710
        %p712 = pneg %p390
        %p713 = pneg %p387
        %p714 = scmp.lt.s32.totalorder %s39, 1
        %s715 = scalar_select %p714, %s39, 1
        %s716 = scalar_lea.vmem %s14, %s715
        %p717 = pneg %p416
        %p718 = pneg %p413
        %p719 = pneg %p442
        %p720 = pneg %p439
        %s721 = sand.u32 %s429, 1
        %s722 = scalar_lea.sflag [#allocation5], %s721
        %s723 = sand.u32 %s429, 1
        %s724 = smul.addr %s723, 4
        %s725 = scalar_lea.vmem [#allocation12], %s724
        %p726 = scmp.lt.s32.totalorder %s38, 1
        %s727 = scalar_select %p726, %s38, 1
        %s728 = scalar_lea.vmem %s2, %s727
        %p729 = scmp.lt.s32.totalorder %s39, 1
        %s730 = scalar_select %p729, %s39, 1
        %s731 = smul.addr %s730, 12
        %s732 = smul.addr %s731, 4
        %s733 = scalar_lea.vmem %s5, %s732
        %p734 = scmp.lt.s32.totalorder %s39, 1
        %s735 = scalar_select %p734, %s39, 1
        %s736 = smul.addr %s735, 4
        %s737 = smul.addr %s736, 4
        %s738 = scalar_lea.vmem %s6, %s737
        %p739 = scmp.lt.s32.totalorder %s39, 1
        %s740 = scalar_select %p739, %s39, 1
        %s741 = scalar_lea.vmem %s7, %s740
        %p742 = scmp.lt.s32.totalorder %s39, 1
        %s743 = scalar_select %p742, %s39, 1
        %s744 = scalar_lea.vmem %s8, %s743
        %p745 = scmp.lt.s32.totalorder %s39, 1
        %s746 = scalar_select %p745, %s39, 1
        %s747 = smul.addr %s746, 4
        %s748 = smul.addr %s747, 4
        %s749 = scalar_lea.vmem %s9, %s748
        %p750 = scmp.lt.s32.totalorder %s39, 1
        %s751 = scalar_select %p750, %s39, 1
        %s752 = scalar_lea.vmem %s10, %s751
        %p753 = scmp.lt.s32.totalorder %s39, 1
        %s754 = scalar_select %p753, %s39, 1
        %s755 = smul.addr %s754, 16
        %s756 = smul.addr %s755, 4
        %s757 = scalar_lea.vmem %s11, %s756
        %p758 = scmp.lt.s32.totalorder %s39, 1
        %s759 = scalar_select %p758, %s39, 1
        %s760 = scalar_lea.vmem %s12, %s759
        %p761 = scmp.lt.s32.totalorder %s39, 1
        %s762 = scalar_select %p761, %s39, 1
        %s763 = scalar_lea.vmem %s14, %s762
        %p765 = scmp.eq.s32.totalorder %s39, 0
        // Predicated region
        $region101: #{tpu_custom_call.1} parent=79 // pred_check
          %p766 = pneg %p765
        $region102: #{tpu_custom_call.1} parent=79 // pred_check_branch
          %768 = sbr.rel (%p766) target = $region104
        $region103: #{tpu_custom_call.1} parent=79 // pred_region
          %v769 = vld [vmem:[%s612] sm:$0xff]
          %v770 = vld [vmem:[#allocation6] sm:$0xff]
          %v771 = vadd.f32 %v769, %v770
          %v772 = vld [vmem:[#allocation8] sm:$0x1]
          %v773 = vld [vmem:[#allocation9] sm:$0x1]
          %vm774 = vcmask 261120
          %v775 = vsel %vm774, %v771, 0.0
          %776 = vadd.xlane.f32.xlu0 %v775
          %v777 = vpop.xlane.xlu0 %776
          %v778 = vrcp.pop 32.0
          %v779 = vmul.f32 32.0, %v778
          %v780 = vsub.f32 1.0, %v779
          %v781 = vmul.f32 %v778, %v780
          %v782 = vadd.f32 %v778, %v781
          %vm783 = vweird.f32 %v778
          %v784 = vsel %vm783, %v778, %v782
          %v785 = vmul.f32 %v777, %v784
          %v786 = vsub.f32 %v771, %v785
          %v787 = vmul.f32 %v786, %v786
          %v788 = vsel %vm774, %v787, 0.0
          %789 = vadd.xlane.f32.xlu0 %v788
          %v790 = vpop.xlane.xlu0 %789
          %v791 = vmul.f32 %v790, %v784
          %v792 = vadd.f32 %v791, 1e-06
          %v793 = vrsqrt.pop %v792
          %v794 = vmul.f32 %v793, %v792
          %v795 = vmul.f32 %v794, %v793
          %v796 = vmul.f32 0.5, %v795
          %v797 = vsub.f32 1.5, %v796
          %v798 = vmul.f32 %v793, %v797
          %vm799 = vweird.f32 %v792
          %vm800 = vweird.f32 %v793
          %vm801 = vmor %vm799, %vm800
          %v802 = vsel %vm801, %v793, %v798
          %v803 = vmul.f32 %v786, %v802
          %v805 = vperm.slane %v772, 0
          %v807 = vmul.f32 %v803, %v805
          %v809 = vperm.slane %v773, 0
          %v811 = vadd.f32 %v807, %v809
          %812 = vst.msk [vmem:[#allocation2] sm:$0xff] %vm774, %v811
        $region104: #{tpu_custom_call.1} parent=79 // pred_fallthru
          _
        %v813 = vld [vmem:[#allocation2] sm:$0xff]
        %v814 = vld [vmem:[%s728] sm:$0x1]
        %v815 = vld [vmem:[%s733] sm:$0xf]
        %v816 = vld [vmem:[%s733 + $0x4] sm:$0xf]
        %v817 = vld [vmem:[%s733 + $0x8] sm:$0xf]
        %v818 = vld [vmem:[%s733 + $0xc] sm:$0xf]
        %v819 = vpack.c.bf16 %v813, %v813
        %v824 = vunpack.c.l.b16 %v815
        %v825 = vunpack.c.l.b16 %v816
        %v826 = vunpack.c.l.b16 %v817
        %v827 = vunpack.c.l.b16 %v818
        %v828 = vpack.c.b16 %v825, %v824
        %v829 = vpack.c.b16 %v827, %v826
        %vm832 = vcmask 261120
        %v834 = vsel %vm832, %v819, 0
        %836 = vmatpush.bf16.msra.mxu0 0
        %837 = vmatpush.bf16.msra.mxu0 0
        %838 = vmatpush.bf16.msra.mxu0 0
        %839 = vmatpush.bf16.msra.mxu0 0
        %840 = vmatpush.bf16.msra.mxu0 0
        %841 = vmatpush.bf16.msra.mxu0 0
        %842 = vmatpush.bf16.msra.mxu0 %v829
        %843 = vmatpush.bf16.msra.mxu0 %v828
        %844 = vmatmul.bf16.gmra.mxu0 %v834
        %v845 = vpop.f32.mrf.mxu0
        %v846 = vadd.f32 0.0, %v845
        %v847 = vpop.f32.mrf.mxu0
        %848 = vdwg.mxu0
        %s849 = scalar_lea.vmem %s733, 16
        %v850 = vld [vmem:[%s849] sm:$0xf]
        %v851 = vld [vmem:[%s849 + $0x4] sm:$0xf]
        %v852 = vld [vmem:[%s849 + $0x8] sm:$0xf]
        %v853 = vld [vmem:[%s849 + $0xc] sm:$0xf]
        %v858 = vunpack.c.l.b16 %v850
        %v859 = vunpack.c.l.b16 %v851
        %v860 = vunpack.c.l.b16 %v852
        %v861 = vunpack.c.l.b16 %v853
        %v862 = vpack.c.b16 %v859, %v858
        %v863 = vpack.c.b16 %v861, %v860
        %866 = vmatpush.bf16.msra.mxu0 0
        %867 = vmatpush.bf16.msra.mxu0 0
        %868 = vmatpush.bf16.msra.mxu0 0
        %869 = vmatpush.bf16.msra.mxu0 0
        %870 = vmatpush.bf16.msra.mxu0 0
        %871 = vmatpush.bf16.msra.mxu0 0
        %872 = vmatpush.bf16.msra.mxu0 %v863
        %873 = vmatpush.bf16.msra.mxu0 %v862
        %874 = vmatmul.bf16.gmra.mxu0 %v834
        %v875 = vpop.f32.mrf.mxu0
        %v876 = vadd.f32 0.0, %v875
        %v877 = vpop.f32.mrf.mxu0
        %878 = vdwg.mxu0
        %s879 = scalar_lea.vmem %s733, 32
        %v880 = vld [vmem:[%s879] sm:$0xf]
        %v881 = vld [vmem:[%s879 + $0x4] sm:$0xf]
        %v882 = vld [vmem:[%s879 + $0x8] sm:$0xf]
        %v883 = vld [vmem:[%s879 + $0xc] sm:$0xf]
        %v888 = vunpack.c.l.b16 %v880
        %v889 = vunpack.c.l.b16 %v881
        %v890 = vunpack.c.l.b16 %v882
        %v891 = vunpack.c.l.b16 %v883
        %v892 = vpack.c.b16 %v889, %v888
        %v893 = vpack.c.b16 %v891, %v890
        %896 = vmatpush.bf16.msra.mxu0 0
        %897 = vmatpush.bf16.msra.mxu0 0
        %898 = vmatpush.bf16.msra.mxu0 0
        %899 = vmatpush.bf16.msra.mxu0 0
        %900 = vmatpush.bf16.msra.mxu0 0
        %901 = vmatpush.bf16.msra.mxu0 0
        %902 = vmatpush.bf16.msra.mxu0 %v893
        %903 = vmatpush.bf16.msra.mxu0 %v892
        %904 = vmatmul.bf16.gmra.mxu0 %v834
        %v905 = vpop.f32.mrf.mxu0
        %v906 = vadd.f32 0.0, %v905
        %v907 = vpop.f32.mrf.mxu0
        %908 = vdwg.mxu0
        %v909 = vpack.c.bf16 %v846, %v846
        %v910 = vpack.c.bf16 %v876, %v876
        %v912 = vsel %vm832, %v909, 0
        %v915 = vsel %vm832, %v910, 0
        %917 = vmatpush.bf16.xpose.msra.mxu0 0
        %918 = vmatpush.bf16.xpose.msra.mxu0 0
        %919 = vmatpush.bf16.xpose.msra.mxu0 0
        %920 = vmatpush.bf16.xpose.msra.mxu0 0
        %921 = vmatpush.bf16.xpose.msra.mxu0 0
        %922 = vmatpush.bf16.xpose.msra.mxu0 0
        %923 = vmatpush.bf16.xpose.msra.mxu0 0
        %924 = vmatpush.bf16.xpose.msra.mxu0 %v915
        %925 = vmatmul.bf16.gmra.mxu0 %v912
        %v926 = vpop.f32.mrf.mxu0
        %v927 = vadd.f32 0.0, %v926
        %v928 = vpop.f32.mrf.mxu0
        %929 = vdwg.mxu0
        %v930 = vmul.f32 %v927, 0.17677669
        %v932 = vperm.slane %v814, 0
        %v934 = vadd.f32 %v930, %v932
        %vm935 = vcmask 64512
        %v936 = vsel %vm935, %v934, -inf
        %937 = vmax.xlane.f32.xlu0 %v936
        %v938 = vpop.xlane.xlu0 %937
        %v939 = vsub.f32 %v934, %v938
        %v940 = vmul.f32 %v939, 1.442695
        %v941 = vpow.pop %v940
        %v942 = vsel %vm935, %v941, 0.0
        %943 = vadd.xlane.f32.xlu0 %v942
        %v944 = vpop.xlane.xlu0 %943
        %v945 = vrcp.pop %v944
        %v946 = vmul.f32 %v941, %v945
        %v947 = vpack.c.bf16 %v946, %v946
        %v948 = vpack.c.bf16 %v906, %v906
        %v950 = vsel %vm935, %v947, 0
        %vm952 = vcmask 1043456
        %v954 = vsel %vm952, %v948, 0
        %956 = vmatpush.bf16.msra.mxu0 0
        %957 = vmatpush.bf16.msra.mxu0 0
        %958 = vmatpush.bf16.msra.mxu0 0
        %959 = vmatpush.bf16.msra.mxu0 0
        %960 = vmatpush.bf16.msra.mxu0 0
        %961 = vmatpush.bf16.msra.mxu0 0
        %962 = vmatpush.bf16.msra.mxu0 0
        %963 = vmatpush.bf16.msra.mxu0 %v954
        %964 = vmatmul.bf16.gmra.mxu0 %v950
        %v965 = vpop.f32.mrf.mxu0
        %v966 = vadd.f32 0.0, %v965
        %v967 = vpop.f32.mrf.mxu0
        %968 = vdwg.mxu0
        %v969 = vld [vmem:[%s738] sm:$0xf]
        %v970 = vld [vmem:[%s738 + $0x4] sm:$0xf]
        %v971 = vld [vmem:[%s738 + $0x8] sm:$0xf]
        %v972 = vld [vmem:[%s738 + $0xc] sm:$0xf]
        %v973 = vpack.c.bf16 %v966, %v966
        %v978 = vunpack.c.l.b16 %v969
        %v979 = vunpack.c.l.b16 %v970
        %v980 = vunpack.c.l.b16 %v971
        %v981 = vunpack.c.l.b16 %v972
        %v982 = vpack.c.b16 %v979, %v978
        %v983 = vpack.c.b16 %v981, %v980
        %v987 = vsel %vm832, %v973, 0
        %989 = vmatpush.bf16.msra.mxu0 0
        %990 = vmatpush.bf16.msra.mxu0 0
        %991 = vmatpush.bf16.msra.mxu0 0
        %992 = vmatpush.bf16.msra.mxu0 0
        %993 = vmatpush.bf16.msra.mxu0 0
        %994 = vmatpush.bf16.msra.mxu0 0
        %995 = vmatpush.bf16.msra.mxu0 %v983
        %996 = vmatpush.bf16.msra.mxu0 %v982
        %997 = vmatmul.bf16.gmra.mxu0 %v987
        %v998 = vpop.f32.mrf.mxu0
        %v999 = vadd.f32 %v813, %v998
        %v1000 = vpop.f32.mrf.mxu0
        %1001 = vdwg.mxu0
        %v1002 = vld [vmem:[%s741] sm:$0x1]
        %v1003 = vld [vmem:[%s744] sm:$0x1]
        %v1004 = vsel %vm832, %v999, 0.0
        %1005 = vadd.xlane.f32.xlu0 %v1004
        %v1006 = vpop.xlane.xlu0 %1005
        %v1007 = vrcp.pop 32.0
        %v1008 = vmul.f32 32.0, %v1007
        %v1009 = vsub.f32 1.0, %v1008
        %v1010 = vmul.f32 %v1007, %v1009
        %v1011 = vadd.f32 %v1007, %v1010
        %vm1012 = vweird.f32 %v1007
        %v1013 = vsel %vm1012, %v1007, %v1011
        %v1014 = vmul.f32 %v1006, %v1013
        %v1015 = vsub.f32 %v999, %v1014
        %v1016 = vmul.f32 %v1015, %v1015
        %v1017 = vsel %vm832, %v1016, 0.0
        %1018 = vadd.xlane.f32.xlu0 %v1017
        %v1019 = vpop.xlane.xlu0 %1018
        %v1020 = vmul.f32 %v1019, %v1013
        %v1021 = vadd.f32 %v1020, 1e-06
        %v1022 = vrsqrt.pop %v1021
        %v1023 = vmul.f32 %v1022, %v1021
        %v1024 = vmul.f32 %v1023, %v1022
        %v1025 = vmul.f32 0.5, %v1024
        %v1026 = vsub.f32 1.5, %v1025
        %v1027 = vmul.f32 %v1022, %v1026
        %vm1028 = vweird.f32 %v1021
        %vm1029 = vweird.f32 %v1022
        %vm1030 = vmor %vm1028, %vm1029
        %v1031 = vsel %vm1030, %v1022, %v1027
        %v1032 = vmul.f32 %v1015, %v1031
        %v1034 = vperm.slane %v1002, 0
        %v1036 = vmul.f32 %v1032, %v1034
        %v1038 = vperm.slane %v1003, 0
        %v1040 = vadd.f32 %v1036, %v1038
        %v1041 = vld [vmem:[%s749] sm:$0xf]
        %v1042 = vld [vmem:[%s749 + $0x4] sm:$0xf]
        %v1043 = vld [vmem:[%s749 + $0x8] sm:$0xf]
        %v1044 = vld [vmem:[%s749 + $0xc] sm:$0xf]
        %v1045 = vpack.c.bf16 %v1040, %v1040
        %v1046 = vld [vmem:[%s752] sm:$0x1]
        %v1048 = vperm.slane %v1046, 0
        %v1054 = vunpack.c.l.b16 %v1041
        %v1055 = vunpack.c.l.b16 %v1042
        %v1056 = vunpack.c.l.b16 %v1043
        %v1057 = vunpack.c.l.b16 %v1044
        %v1058 = vpack.c.b16 %v1055, %v1054
        %v1059 = vpack.c.b16 %v1057, %v1056
        %v1063 = vsel %vm832, %v1045, 0
        %1065 = vmatpush.bf16.msra.mxu0 0
        %1066 = vmatpush.bf16.msra.mxu0 0
        %1067 = vmatpush.bf16.msra.mxu0 0
        %1068 = vmatpush.bf16.msra.mxu0 0
        %1069 = vmatpush.bf16.msra.mxu0 0
        %1070 = vmatpush.bf16.msra.mxu0 0
        %1071 = vmatpush.bf16.msra.mxu0 %v1059
        %1072 = vmatpush.bf16.msra.mxu0 %v1058
        %1073 = vmatmul.bf16.gmra.mxu0 %v1063
        %v1074 = vpop.f32.mrf.mxu0
        %v1075 = vadd.f32 %v1048, %v1074
        %v1076 = vpop.f32.mrf.mxu0
        %1077 = vdwg.mxu0
        %v1078 = vmul.f32 %v1075, 0.5
        %v1079 = vmul.f32 %v1075, 0.70710677
        %v1080 = vmul.f32 %v1079, %v1079
        %v1081 = vmin.f32 16.0, %v1080
        %v1082 = vmul.f32 %v1081, 2.1237322e-06
        %v1083 = vadd.f32 %v1082, 0.00028619796
        %v1084 = vmul.f32 %v1081, %v1083
        %v1085 = vadd.f32 %v1084, 0.0036580483
        %v1086 = vmul.f32 %v1081, %v1085
        %v1087 = vadd.f32 %v1086, 0.05243302
        %v1088 = vmul.f32 %v1081, %v1087
        %v1089 = vadd.f32 %v1088, 0.18741608
        %v1090 = vmul.f32 %v1081, %v1089
        %v1091 = vadd.f32 %v1090, 1.1283791
        %v1092 = vmul.f32 %v1079, %v1091
        %v1093 = vmul.f32 %v1081, 3.8918573e-05
        %v1094 = vadd.f32 %v1093, 0.001143296
        %v1095 = vmul.f32 %v1081, %v1094
        %v1096 = vadd.f32 %v1095, 0.014752088
        %v1097 = vmul.f32 %v1081, %v1096
        %v1098 = vadd.f32 %v1097, 0.112945676
        %v1099 = vmul.f32 %v1081, %v1098
        %v1100 = vadd.f32 %v1099, 0.4994258
        %v1101 = vmul.f32 %v1081, %v1100
        %v1102 = vadd.f32 %v1101, 1.0
        %v1103 = vrcp.pop %v1102
        %v1104 = vmul.f32 %v1102, %v1103
        %v1105 = vsub.f32 1.0, %v1104
        %v1106 = vmul.f32 %v1103, %v1105
        %v1107 = vadd.f32 %v1103, %v1106
        %vm1108 = vweird.f32 %v1102
        %vm1109 = vweird.f32 %v1103
        %vm1110 = vmor %vm1108, %vm1109
        %v1111 = vsel %vm1110, %v1103, %v1107
        %v1112 = vand.u32 2147483647, %v1102
        %vm1113 = vcmp.eq.f32.partialorder %v1112, 8.507059e+37
        %v1114 = vand.u32 %v1102, 2147483648
        %v1115 = vor.u32 1.1754944e-38, %v1114
        %v1116 = vsel %vm1113, %v1115, %v1111
        %v1117 = vmul.f32 %v1092, %v1116
        %v1118 = vmin.f32 %v1117, 1.0
        %v1119 = vmax.f32 %v1118, -1.0
        %v1120 = vadd.f32 %v1119, 1.0
        %v1121 = vmul.f32 %v1078, %v1120
        %v1122 = vld [vmem:[%s757] sm:$0xf]
        %v1123 = vld [vmem:[%s757 + $0x4] sm:$0xf]
        %v1124 = vld [vmem:[%s757 + $0x8] sm:$0xf]
        %v1125 = vld [vmem:[%s757 + $0xc] sm:$0xf]
        %v1126 = vld [vmem:[%s757 + $0x10] sm:$0xf]
        %v1127 = vld [vmem:[%s757 + $0x14] sm:$0xf]
        %v1128 = vld [vmem:[%s757 + $0x18] sm:$0xf]
        %v1129 = vld [vmem:[%s757 + $0x1c] sm:$0xf]
        %v1130 = vld [vmem:[%s757 + $0x20] sm:$0xf]
        %v1131 = vld [vmem:[%s757 + $0x24] sm:$0xf]
        %v1132 = vld [vmem:[%s757 + $0x28] sm:$0xf]
        %v1133 = vld [vmem:[%s757 + $0x2c] sm:$0xf]
        %v1134 = vld [vmem:[%s757 + $0x30] sm:$0xf]
        %v1135 = vld [vmem:[%s757 + $0x34] sm:$0xf]
        %v1136 = vld [vmem:[%s757 + $0x38] sm:$0xf]
        %v1137 = vld [vmem:[%s757 + $0x3c] sm:$0xf]
        %v1138 = vpack.c.bf16 %v1121, %v1121
        %v1139 = vld [vmem:[%s760] sm:$0x1]
        %v1141 = vperm.slane %v1139, 0
        %v1159 = vunpack.c.l.b16 %v1122
        %v1160 = vunpack.c.l.b16 %v1123
        %v1161 = vunpack.c.l.b16 %v1124
        %v1162 = vunpack.c.l.b16 %v1125
        %v1163 = vunpack.c.l.b16 %v1126
        %v1164 = vunpack.c.l.b16 %v1127
        %v1165 = vunpack.c.l.b16 %v1128
        %v1166 = vunpack.c.l.b16 %v1129
        %v1167 = vunpack.c.l.b16 %v1130
        %v1168 = vunpack.c.l.b16 %v1131
        %v1169 = vunpack.c.l.b16 %v1132
        %v1170 = vunpack.c.l.b16 %v1133
        %v1171 = vunpack.c.l.b16 %v1134
        %v1172 = vunpack.c.l.b16 %v1135
        %v1173 = vunpack.c.l.b16 %v1136
        %v1174 = vunpack.c.l.b16 %v1137
        %v1175 = vpack.c.b16 %v1160, %v1159
        %v1176 = vpack.c.b16 %v1162, %v1161
        %v1177 = vpack.c.b16 %v1164, %v1163
        %v1178 = vpack.c.b16 %v1166, %v1165
        %v1179 = vpack.c.b16 %v1168, %v1167
        %v1180 = vpack.c.b16 %v1170, %v1169
        %v1181 = vpack.c.b16 %v1172, %v1171
        %v1182 = vpack.c.b16 %v1174, %v1173
        %1191 = vmatpush.bf16.msra.mxu0 %v1182
        %1192 = vmatpush.bf16.msra.mxu0 %v1181
        %1193 = vmatpush.bf16.msra.mxu0 %v1180
        %1194 = vmatpush.bf16.msra.mxu0 %v1179
        %1195 = vmatpush.bf16.msra.mxu0 %v1178
        %1196 = vmatpush.bf16.msra.mxu0 %v1177
        %1197 = vmatpush.bf16.msra.mxu0 %v1176
        %1198 = vmatpush.bf16.msra.mxu0 %v1175
        %1199 = vmatmul.bf16.gmra.mxu0 %v1138
        %v1200 = vpop.f32.mrf.mxu0
        %v1201 = vadd.f32 %v1141, %v1200
        %v1202 = vpop.f32.mrf.mxu0
        %1203 = vdwg.mxu0
        %v1204 = vadd.f32 %v1201, %v1040
        %v1205 = vld [vmem:[%s636] sm:$0x1]
        %v1206 = vld [vmem:[%s763] sm:$0x1]
        %v1207 = vsel %vm832, %v1204, 0.0
        %1208 = vadd.xlane.f32.xlu0 %v1207
        %v1209 = vpop.xlane.xlu0 %1208
        %v1210 = vmul.f32 %v1209, %v1013
        %v1211 = vsub.f32 %v1204, %v1210
        %v1212 = vmul.f32 %v1211, %v1211
        %v1213 = vsel %vm832, %v1212, 0.0
        %1214 = vadd.xlane.f32.xlu0 %v1213
        %v1215 = vpop.xlane.xlu0 %1214
        %v1216 = vmul.f32 %v1215, %v1013
        %v1217 = vadd.f32 %v1216, 1e-06
        %v1218 = vrsqrt.pop %v1217
        %v1219 = vmul.f32 %v1218, %v1217
        %v1220 = vmul.f32 %v1219, %v1218
        %v1221 = vmul.f32 0.5, %v1220
        %v1222 = vsub.f32 1.5, %v1221
        %v1223 = vmul.f32 %v1218, %v1222
        %vm1224 = vweird.f32 %v1217
        %vm1225 = vweird.f32 %v1218
        %vm1226 = vmor %vm1224, %vm1225
        %v1227 = vsel %vm1226, %v1218, %v1223
        %v1228 = vmul.f32 %v1211, %v1227
        %v1230 = vperm.slane %v1205, 0
        %v1232 = vmul.f32 %v1228, %v1230
        %v1234 = vperm.slane %v1206, 0
        %v1236 = vadd.f32 %v1232, %v1234
        %1237 = vst.msk [vmem:[#allocation2] sm:$0xff] %vm832, %v1236
        %p1238 = scmp.eq.s32.totalorder %s39, 1
        // Predicated region
        $region105: #{tpu_custom_call.1} parent=79 // pred_check
          %p1239 = pneg %p1238
        $region106: #{tpu_custom_call.1} parent=79 // pred_check_branch
          %1241 = sbr.rel (%p1239) target = $region108
        $region107: #{tpu_custom_call.1} parent=79 // pred_region
          %v1242 = vpack.c.bf16 %v1236, %v1236
          %vm1243 = vcmask 257024
          %1244 = vst.msk [vmem:[%s725] sm:$0xf] %vm1243, %v1242
        $region108: #{tpu_custom_call.1} parent=79 // pred_fallthru
          _
        %s1245 = sand.u32 %s429, 1
        %s1246 = scalar_lea.sflag [#allocation5], %s1245
        %s1247 = sand.u32 %s429, 1
        %s1248 = smul.addr %s1247, 4
        %s1249 = scalar_lea.vmem [#allocation12], %s1248
        // Predicated region
        $region109: #{tpu_custom_call.1} parent=79 // pred_check
          %p1250 = pneg %p439
        $region110: #{tpu_custom_call.1} parent=79 // pred_check_branch
          %1252 = sbr.rel (%p1250) target = $region112
        $region111: #{tpu_custom_call.1} parent=79 // pred_region
          %1254 = vsyncadd %s1246, 0
          %s1255 = smul.addr %s38, 4
          %s1256 = scalar_lea.hbm %s15, %s1255
          %s1258 = sshll.u32 %s1249, 4
          %s1259 = int_to_ptr.vmem [resolvable:$true] %s1258
          %s1260 = sshll.u32 %s1256, 4
          %s1261 = int_to_ptr.hbm [resolvable:$true] %s1260
          %1263 = dma.vmem_to_hbm [thread:$0]  %s1259, 64, %s1261, %s1246
        $region112: #{tpu_custom_call.1} parent=79 // pred_fallthru
          _
      $region80: #{tpu_custom_call.1} parent=5 // pred_fallthru
        _
      %p1264 = scmp.le.s32.totalorder 2, %s29
      // Predicated region
      $region113: #{tpu_custom_call.1} parent=5 // pred_check
        %p1265 = pneg %p1264
      $region114: #{tpu_custom_call.1} parent=5 // pred_check_branch
        %1267 = sbr.rel (%p1265) target = $region116
      $region115: #{tpu_custom_call.1} parent=5 // pred_region
        %s1268 = ssub.s32 %s29, 2
        // Predicated region
        $region117: #{tpu_custom_call.1} parent=115 // pred_check
          %p1269 = pneg %p445
        $region118: #{tpu_custom_call.1} parent=115 // pred_check_branch
          %1271 = sbr.rel (%p1269) target = $region120
        $region119: #{tpu_custom_call.1} parent=115 // pred_region
          %s1272 = sand.u32 %s430, 1
          %s1273 = scalar_lea.sflag [#allocation5], %s1272
          %s1274 = sand.u32 %s430, 1
          %s1275 = smul.addr %s1274, 4
          %s1276 = scalar_lea.vmem [#allocation12], %s1275
          %1278 = dma.done %s1273, 64
        $region120: #{tpu_custom_call.1} parent=115 // pred_fallthru
          _
      $region116: #{tpu_custom_call.1} parent=5 // pred_fallthru
        _
    $region6: #{tpu_custom_call.1} parent=1 // loop_footer
      %s33 = sadd.s32 1, %s29
    $region7: #{tpu_custom_call.1} parent=1 // loop_footer_branch
      %28 = sbr.rel target = $region3
    $region8: #{tpu_custom_call.1} parent=1 // loop_exit
      _
    %1279 = vsyncpa [#allocation4], 1
    %s1280 = scalar_lea.sflag [#allocation4], 1
    %1281 = vsyncpa %s1280, 1
    %1282 = vsyncpa [#allocation7], 1
    %1283 = vsyncpa [#allocation10], 1
    %1284 = vsyncpa [#allocation5], 1
    %s1285 = scalar_lea.sflag [#allocation5], 1
    %1286 = vsyncpa %s1285, 1

</llo_original>
